<compile_context>
chip_gen: v5e
topology: v5e:2x2
jax: 0.10.0
libtpu: 0.0.40
codegen_flags: <defaults>
</compile_context>

<pallas_src>
import functools
import math

import jax
import jax.numpy as jnp
from jax import lax
from jax.experimental import pallas as pl
from jax.experimental.pallas import tpu as pltpu


# ----------------------------------------------------------------------------
# Small deterministic config (analogue of GPTConfig, shrunk for the demo)
# ----------------------------------------------------------------------------
BLOCK_SIZE = 16     # max sequence length
VOCAB_SIZE = 128
N_LAYER    = 2
N_HEAD     = 2
N_EMBD     = 32
LN_EPS     = 1e-5


def _layernorm(x, gamma, beta, eps=LN_EPS):
    mu = jnp.mean(x, axis=-1, keepdims=True)
    var = jnp.mean((x - mu) ** 2, axis=-1, keepdims=True)
    return (x - mu) * lax.rsqrt(var + eps) * gamma + beta


def _gelu_tanh(x):
    # GELU(approximate='tanh')
    c = math.sqrt(2.0 / math.pi)
    return 0.5 * x * (1.0 + jnp.tanh(c * (x + 0.044715 * x * x * x)))


# ----------------------------------------------------------------------------
# Fused GPT kernel.  Grid = (batch, layer): batch is "parallel" (v7x megacore),
# layer is "arbitrary" with the (T, C) activations resident in a VMEM scratch.
# Per-layer weights are blocked (squeezed) on the layer axis so Pallas
# double-buffers next-layer weights while the current layer computes.
# Final layernorm + lm_head run inside the last layer step.
# ----------------------------------------------------------------------------
def _gpt_kernel(x_ref,
                ln1_ref, wqkv_ref, bqkv_ref, wo_ref, bo_ref,
                ln2_ref, wfc_ref, bfc_ref, wmp_ref, bmp_ref,
                lnf_ref, wlm_ref,
                logits_ref,
                x_scr,
                *, n_head, n_embd, seq):
    layer = pl.program_id(1)
    n_layers = pl.num_programs(1)

    C, H, T = n_embd, n_head, seq
    hs = C // H
    scale = 1.0 / math.sqrt(hs)

    # Load this batch's token+pos embeddings into the resident scratch once.
    @pl.when(layer == 0)
    def _():
        x_scr[...] = x_ref[...]

    x = x_scr[...]                                             # (T, C) f32

    # --- attention branch ---------------------------------------------------
    h_ln = _layernorm(x, ln1_ref[0:1, :], ln1_ref[1:2, :])     # (T, C)

    # Fused QKV: one lane-dense (T, C) @ (C, 3C) matmul, bf16 operands,
    # f32 accumulation, single fused bias.
    qkv = jnp.dot(h_ln.astype(jnp.bfloat16), wqkv_ref[...],
                  preferred_element_type=jnp.float32) + bqkv_ref[...]   # (T, 3C)

    row = lax.broadcasted_iota(jnp.int32, (T, T), 0)
    col = lax.broadcasted_iota(jnp.int32, (T, T), 1)
    causal = row >= col                                        # (T, T)

    heads = []
    for h in range(H):                                         # static head loop
        qh = qkv[:, 0 * C + h * hs:0 * C + (h + 1) * hs]       # (T, hs)
        kh = qkv[:, 1 * C + h * hs:1 * C + (h + 1) * hs]
        vh = qkv[:, 2 * C + h * hs:2 * C + (h + 1) * hs]

        s = jnp.einsum('qd,kd->qk', qh, kh,
                       preferred_element_type=jnp.float32) * scale     # (T, T)
        s = jnp.where(causal, s, -1e30)
        s = s - jnp.max(s, axis=-1, keepdims=True)
        p = jnp.exp(s)
        p = p * pl.reciprocal(jnp.sum(p, axis=-1, keepdims=True), approx=True)
        heads.append(jnp.dot(p, vh, preferred_element_type=jnp.float32))

    # Recombine heads on the lane axis (static layout op), then a single
    # full-K output projection (T, C) @ (C, C).
    y = jnp.concatenate(heads, axis=-1)                        # (T, C)
    att = jnp.dot(y.astype(jnp.bfloat16), wo_ref[...],
                  preferred_element_type=jnp.float32) + bo_ref[...]
    x = x + att                                                # residual 1

    # --- MLP branch ----------------------------------------------------------
    h2 = _layernorm(x, ln2_ref[0:1, :], ln2_ref[1:2, :])
    ff = jnp.dot(h2.astype(jnp.bfloat16), wfc_ref[...],
                 preferred_element_type=jnp.float32) + bfc_ref[...]    # (T, 4C)
    ff = _gelu_tanh(ff)
    ff = jnp.dot(ff.astype(jnp.bfloat16), wmp_ref[...],
                 preferred_element_type=jnp.float32) + bmp_ref[...]    # (T, C)
    x = x + ff                                                 # residual 2

    x_scr[...] = x

    # --- fused final layernorm + tied lm_head on the last layer step ---------
    @pl.when(layer == n_layers - 1)
    def _():
        hf = _layernorm(x, lnf_ref[0:1, :], lnf_ref[1:2, :])
        logits_ref[...] = jnp.dot(hf.astype(jnp.bfloat16), wlm_ref[...],
                                  preferred_element_type=jnp.float32)  # (T, V)


# ----------------------------------------------------------------------------
# Parameter init (deterministic, mirrors GPT._init_weights).
# Matmul weights stacked along a leading layer axis, stored bf16 (MXU-native);
# LN params / biases kept f32 (added to f32 accumulations).
# ----------------------------------------------------------------------------
def init_params(key):
    C, V, L = N_EMBD, VOCAB_SIZE, N_LAYER
    std = 0.02
    proj_std = 0.02 * (2 * L) ** (-0.5)      # NANOGPT_SCALE_INIT

    keys = jax.random.split(key, 6)
    wte = std * jax.random.normal(keys[0], (V, C), jnp.float32)
    wpe = std * jax.random.normal(keys[1], (BLOCK_SIZE, C), jnp.float32)

    wqkv = (std * jax.random.normal(keys[2], (L, C, 3 * C), jnp.float32)
            ).astype(jnp.bfloat16)
    bqkv = jnp.zeros((L, 1, 3 * C), jnp.float32)

    wo = (proj_std * jax.random.normal(keys[3], (L, C, C), jnp.float32)
          ).astype(jnp.bfloat16)
    bo = jnp.zeros((L, 1, C), jnp.float32)

    wfc = (std * jax.random.normal(keys[4], (L, C, 4 * C), jnp.float32)
           ).astype(jnp.bfloat16)
    bfc = jnp.zeros((L, 1, 4 * C), jnp.float32)
    wmp = (proj_std * jax.random.normal(keys[5], (L, 4 * C, C), jnp.float32)
           ).astype(jnp.bfloat16)
    bmp = jnp.zeros((L, 1, C), jnp.float32)

    # LayerNorm gamma (row 0) / beta (row 1) packed: (L, 2, C)
    ln1 = jnp.stack([jnp.ones((L, C), jnp.float32),
                     jnp.zeros((L, C), jnp.float32)], axis=1)
    ln2 = jnp.stack([jnp.ones((L, C), jnp.float32),
                     jnp.zeros((L, C), jnp.float32)], axis=1)
    lnf = jnp.stack([jnp.ones((C,), jnp.float32),
                     jnp.zeros((C,), jnp.float32)], axis=0)            # (2, C)

    # lm_head tied to wte; materialized transposed copy (frozen forward only).
    w_lm = wte.T.astype(jnp.bfloat16)                                   # (C, V)

    return dict(wte=wte, wpe=wpe,
                ln1=ln1, wqkv=wqkv, bqkv=bqkv, wo=wo, bo=bo,
                ln2=ln2, wfc=wfc, bfc=bfc, wmp=wmp, bmp=bmp,
                lnf=lnf, w_lm=w_lm)


# ----------------------------------------------------------------------------
# Full GPT forward (logits only; targets/loss path not exercised here)
# ----------------------------------------------------------------------------
def gpt_forward(params, idx):
    B, T = idx.shape
    assert T <= BLOCK_SIZE
    C, V, L = N_EMBD, VOCAB_SIZE, N_LAYER

    # Embedding gathers are glue (plain JAX).
    tok_emb = jnp.take(params["wte"], idx, axis=0)            # (B, T, C)
    pos_emb = params["wpe"][:T]                               # (T, C)
    x = tok_emb + pos_emb[None, :, :]                         # (B, T, C) f32

    p = params
    kernel = functools.partial(_gpt_kernel, n_head=N_HEAD, n_embd=C, seq=T)

    def per_batch(shape_rest):
        n = len(shape_rest)
        return pl.BlockSpec((None,) + tuple(shape_rest),
                            lambda b, l, _n=n: (b,) + (0,) * _n)

    def per_layer(arr):
        rest = tuple(arr.shape[1:])
        n = len(rest)
        return pl.BlockSpec((None,) + rest,
                            lambda b, l, _n=n: (l,) + (0,) * _n)

    def shared(arr):
        n = arr.ndim
        return pl.BlockSpec(tuple(arr.shape),
                            lambda b, l, _n=n: (0,) * _n)

    in_specs = [
        per_batch((T, C)),                                    # embeddings
        per_layer(p["ln1"]),
        per_layer(p["wqkv"]), per_layer(p["bqkv"]),
        per_layer(p["wo"]), per_layer(p["bo"]),
        per_layer(p["ln2"]),
        per_layer(p["wfc"]), per_layer(p["bfc"]),
        per_layer(p["wmp"]), per_layer(p["bmp"]),
        shared(p["lnf"]),
        shared(p["w_lm"]),
        # TODO(synk): at real vocab / hidden sizes, tile w_lm + logits over a
        # vocab axis (separate pallas_call) and set vmem_limit_bytes for v7x.
    ]

    logits = pl.pallas_call(
        kernel,
        out_shape=jax.ShapeDtypeStruct((B, T, V), jnp.float32),
        grid=(B, L),
        in_specs=in_specs,
        out_specs=per_batch((T, V)),
        scratch_shapes=[pltpu.VMEM((T, C), jnp.float32)],     # resident activations
        compiler_params=pltpu.CompilerParams(
            dimension_semantics=("parallel", "arbitrary")),
    )(x,
      p["ln1"], p["wqkv"], p["bqkv"], p["wo"], p["bo"],
      p["ln2"], p["wfc"], p["bfc"], p["wmp"], p["bmp"],
      p["lnf"], p["w_lm"])

    return logits                                             # (B, T, V)


if __name__ == "__main__":
    key = jax.random.PRNGKey(0)
    pkey, dkey = jax.random.split(key)
    params = init_params(pkey)

    B, T = 2, 8
    idx = jax.random.randint(dkey, (B, T), 0, VOCAB_SIZE, dtype=jnp.int32)

    logits = jax.jit(gpt_forward)(params, idx)
    jax.block_until_ready(logits)
    assert logits.shape == (B, T, VOCAB_SIZE)
    assert bool(jnp.all(jnp.isfinite(logits)))
    print("KERNEL_OK")
</pallas_src>

<mosaic_0001>
module attributes {stable_mosaic.version = 11 : i64} {
  func.func @_gpt_kernel(%arg0: i32, %arg1: i32, %arg2: memref<1x8x32xf32, #tpu.memory_space<vmem>>, %arg3: memref<1x2x32xf32, #tpu.memory_space<vmem>>, %arg4: memref<1x32x96xbf16, #tpu.memory_space<vmem>>, %arg5: memref<1x1x96xf32, #tpu.memory_space<vmem>>, %arg6: memref<1x32x32xbf16, #tpu.memory_space<vmem>>, %arg7: memref<1x1x32xf32, #tpu.memory_space<vmem>>, %arg8: memref<1x2x32xf32, #tpu.memory_space<vmem>>, %arg9: memref<1x32x128xbf16, #tpu.memory_space<vmem>>, %arg10: memref<1x1x128xf32, #tpu.memory_space<vmem>>, %arg11: memref<1x128x32xbf16, #tpu.memory_space<vmem>>, %arg12: memref<1x1x32xf32, #tpu.memory_space<vmem>>, %arg13: memref<2x32xf32, #tpu.memory_space<vmem>>, %arg14: memref<32x128xbf16, #tpu.memory_space<vmem>>, %arg15: memref<1x8x128xf32, #tpu.memory_space<vmem>>, %arg16: memref<8x32xf32, #tpu.memory_space<vmem>>) attributes {dimension_semantics = [#tpu.dimension_semantics<parallel>, #tpu.dimension_semantics<arbitrary>], iteration_bounds = array<i64: 2, 2>, scalar_prefetch = 0 : i64, scratch_operands = 1 : i64, tpu.core_type = #tpu.core_type<tc>, window_params = [{transform_indices = @transform_0, window_bounds = array<i64: 1, 8, 32>}, {transform_indices = @transform_1, window_bounds = array<i64: 1, 2, 32>}, {transform_indices = @transform_2, window_bounds = array<i64: 1, 32, 96>}, {transform_indices = @transform_3, window_bounds = array<i64: 1, 1, 96>}, {transform_indices = @transform_4, window_bounds = array<i64: 1, 32, 32>}, {transform_indices = @transform_5, window_bounds = array<i64: 1, 1, 32>}, {transform_indices = @transform_6, window_bounds = array<i64: 1, 2, 32>}, {transform_indices = @transform_7, window_bounds = array<i64: 1, 32, 128>}, {transform_indices = @transform_8, window_bounds = array<i64: 1, 1, 128>}, {transform_indices = @transform_9, window_bounds = array<i64: 1, 128, 32>}, {transform_indices = @transform_10, window_bounds = array<i64: 1, 1, 32>}, {pipeline_mode = #tpu.pipeline_mode<synchronous>, transform_indices = @transform_11, window_bounds = array<i64: 2, 32>}, {pipeline_mode = #tpu.pipeline_mode<synchronous>, transform_indices = @transform_12, window_bounds = array<i64: 32, 128>}, {transform_indices = @transform_13, window_bounds = array<i64: 1, 8, 128>}]} {
    %c0_i32 = arith.constant 0 : i32
    %0 = arith.cmpi eq, %arg1, %c0_i32 : i32
    %1 = arith.extui %0 : i1 to i32
    %c0_i32_0 = arith.constant 0 : i32
    %2 = arith.cmpi ne, %1, %c0_i32_0 : i32
    scf.if %2 {
      %c0_69 = arith.constant 0 : index
      %c0_70 = arith.constant 0 : index
      %c0_71 = arith.constant 0 : index
      %149 = vector.load %arg2[%c0_69, %c0_70, %c0_71] : memref<1x8x32xf32, #tpu.memory_space<vmem>>, vector<1x8x32xf32>
      %150 = vector.shape_cast %149 : vector<1x8x32xf32> to vector<8x32xf32>
      %c0_72 = arith.constant 0 : index
      %c0_73 = arith.constant 0 : index
      %151 = vector.load %arg16[%c0_72, %c0_73] : memref<8x32xf32, #tpu.memory_space<vmem>>, vector<8x32xf32>
      tpu.vector_store %arg16[%c0_72, %c0_73], %150 {strides = array<i32>} : memref<8x32xf32, #tpu.memory_space<vmem>>, vector<8x32xf32>,
    } else {
    }
    %c0 = arith.constant 0 : index
    %c0_1 = arith.constant 0 : index
    %3 = vector.load %arg16[%c0, %c0_1] : memref<8x32xf32, #tpu.memory_space<vmem>>, vector<8x32xf32>
    %c0_2 = arith.constant 0 : index
    %c0_3 = arith.constant 0 : index
    %c0_4 = arith.constant 0 : index
    %4 = vector.load %arg3[%c0_2, %c0_3, %c0_4] : memref<1x2x32xf32, #tpu.memory_space<vmem>>, vector<1x1x32xf32>
    %5 = vector.shape_cast %4 : vector<1x1x32xf32> to vector<1x32xf32>
    %c0_5 = arith.constant 0 : index
    %c1 = arith.constant 1 : index
    %c0_6 = arith.constant 0 : index
    %6 = vector.load %arg3[%c0_5, %c1, %c0_6] : memref<1x2x32xf32, #tpu.memory_space<vmem>>, vector<1x1x32xf32>
    %7 = vector.shape_cast %6 : vector<1x1x32xf32> to vector<1x32xf32>
    %cst = arith.constant dense<0.000000e+00> : vector<8xf32>
    %8 = vector.multi_reduction <add>, %3, %cst [1] : vector<8x32xf32> to vector<8xf32>
    %9 = vector.shape_cast %8 : vector<8xf32> to vector<8x1xf32>
    %cst_7 = arith.constant 3.200000e+01 : f32
    %10 = vector.broadcast %cst_7 : f32 to vector<8x1xf32>
    %11 = arith.divf %9, %10 : vector<8x1xf32>
    %12 = vector.broadcast %11 : vector<8x1xf32> to vector<8x32xf32>
    %13 = arith.subf %3, %12 : vector<8x32xf32>
    %14 = arith.mulf %13, %13 : vector<8x32xf32>
    %cst_8 = arith.constant dense<0.000000e+00> : vector<8xf32>
    %15 = vector.multi_reduction <add>, %14, %cst_8 [1] : vector<8x32xf32> to vector<8xf32>
    %16 = vector.shape_cast %15 : vector<8xf32> to vector<8x1xf32>
    %cst_9 = arith.constant 3.200000e+01 : f32
    %17 = vector.broadcast %cst_9 : f32 to vector<8x1xf32>
    %18 = arith.divf %16, %17 : vector<8x1xf32>
    %19 = vector.broadcast %11 : vector<8x1xf32> to vector<8x32xf32>
    %20 = arith.subf %3, %19 : vector<8x32xf32>
    %cst_10 = arith.constant 9.99999974E-6 : f32
    %21 = vector.broadcast %cst_10 : f32 to vector<8x1xf32>
    %22 = arith.addf %18, %21 : vector<8x1xf32>
    %23 = math.rsqrt %22 : vector<8x1xf32>
    %24 = vector.broadcast %23 : vector<8x1xf32> to vector<8x32xf32>
    %25 = arith.mulf %20, %24 : vector<8x32xf32>
    %26 = vector.broadcast %5 : vector<1x32xf32> to vector<8x32xf32>
    %27 = arith.mulf %25, %26 : vector<8x32xf32>
    %28 = vector.broadcast %7 : vector<1x32xf32> to vector<8x32xf32>
    %29 = arith.addf %27, %28 : vector<8x32xf32>
    %30 = arith.truncf %29 : vector<8x32xf32> to vector<8x32xbf16>
    %c0_11 = arith.constant 0 : index
    %c0_12 = arith.constant 0 : index
    %c0_13 = arith.constant 0 : index
    %31 = vector.load %arg4[%c0_11, %c0_12, %c0_13] : memref<1x32x96xbf16, #tpu.memory_space<vmem>>, vector<1x32x96xbf16>
    %32 = vector.shape_cast %31 : vector<1x32x96xbf16> to vector<32x96xbf16>
    %cst_14 = arith.constant dense<0.000000e+00> : vector<8x96xf32>
    %33 = tpu.matmul %30, %32, %cst_14 {dimension_numbers = #tpu.dot_dimension_numbers<[1], [0], [0], [1], [0, 0, 1, 1], [], []>} : vector<8x32xbf16>, vector<32x96xbf16>, vector<8x96xf32> -> vector<8x96xf32>
    %c0_15 = arith.constant 0 : index
    %c0_16 = arith.constant 0 : index
    %c0_17 = arith.constant 0 : index
    %34 = vector.load %arg5[%c0_15, %c0_16, %c0_17] : memref<1x1x96xf32, #tpu.memory_space<vmem>>, vector<1x1x96xf32>
    %35 = vector.shape_cast %34 : vector<1x1x96xf32> to vector<1x96xf32>
    %36 = vector.broadcast %35 : vector<1x96xf32> to vector<8x96xf32>
    %37 = arith.addf %33, %36 : vector<8x96xf32>
    %38 = tpu.iota {dimensions = array<i32: 0>} : vector<8x8xi32>
    %39 = tpu.iota {dimensions = array<i32: 1>} : vector<8x8xi32>
    %40 = arith.cmpi sge, %38, %39 : vector<8x8xi32>
    %41 = vector.extract_strided_slice %37 {offsets = [0, 0], sizes = [8, 16], strides = [1, 1]} : vector<8x96xf32> to vector<8x16xf32>
    %42 = vector.extract_strided_slice %37 {offsets = [0, 32], sizes = [8, 16], strides = [1, 1]} : vector<8x96xf32> to vector<8x16xf32>
    %43 = vector.extract_strided_slice %37 {offsets = [0, 64], sizes = [8, 16], strides = [1, 1]} : vector<8x96xf32> to vector<8x16xf32>
    "tpu.trace_start"() <{level = 10 : i32, message = "qd,kd->qk"}> : () -> ()
    %cst_18 = arith.constant dense<0.000000e+00> : vector<8x8xf32>
    %44 = tpu.matmul %41, %42, %cst_18 {dimension_numbers = #tpu.dot_dimension_numbers<[1], [1], [0], [0], [0, 0, 1, 0], [], []>} : vector<8x16xf32>, vector<8x16xf32>, vector<8x8xf32> -> vector<8x8xf32>
    "tpu.trace_stop"() : () -> ()
    %cst_19 = arith.constant 2.500000e-01 : f32
    %45 = vector.broadcast %cst_19 : f32 to vector<8x8xf32>
    %46 = arith.mulf %44, %45 : vector<8x8xf32>
    %cst_20 = arith.constant -1.000000e+30 : f32
    %47 = vector.broadcast %cst_20 : f32 to vector<8x8xf32>
    %48 = arith.select %40, %46, %47 : vector<8x8xi1>, vector<8x8xf32>
    %cst_21 = arith.constant dense<0xFF800000> : vector<8xf32>
    %49 = vector.multi_reduction <maximumf>, %48, %cst_21 [1] : vector<8x8xf32> to vector<8xf32>
    %50 = vector.shape_cast %49 : vector<8xf32> to vector<8x1xf32>
    %51 = vector.broadcast %50 : vector<8x1xf32> to vector<8x8xf32>
    %52 = arith.subf %48, %51 : vector<8x8xf32>
    %53 = math.exp %52 : vector<8x8xf32>
    %cst_22 = arith.constant dense<0.000000e+00> : vector<8xf32>
    %54 = vector.multi_reduction <add>, %53, %cst_22 [1] : vector<8x8xf32> to vector<8xf32>
    %55 = vector.shape_cast %54 : vector<8xf32> to vector<8x1xf32>
    %56 = tpu.reciprocal %55 {approx = true} : vector<8x1xf32> -> vector<8x1xf32>
    %57 = vector.broadcast %56 : vector<8x1xf32> to vector<8x8xf32>
    %58 = arith.mulf %53, %57 : vector<8x8xf32>
    %cst_23 = arith.constant dense<0.000000e+00> : vector<8x16xf32>
    %59 = tpu.matmul %58, %43, %cst_23 {dimension_numbers = #tpu.dot_dimension_numbers<[1], [0], [0], [1], [0, 0, 1, 1], [], []>} : vector<8x8xf32>, vector<8x16xf32>, vector<8x16xf32> -> vector<8x16xf32>
    %60 = vector.extract_strided_slice %37 {offsets = [0, 16], sizes = [8, 16], strides = [1, 1]} : vector<8x96xf32> to vector<8x16xf32>
    %61 = vector.extract_strided_slice %37 {offsets = [0, 48], sizes = [8, 16], strides = [1, 1]} : vector<8x96xf32> to vector<8x16xf32>
    %62 = vector.extract_strided_slice %37 {offsets = [0, 80], sizes = [8, 16], strides = [1, 1]} : vector<8x96xf32> to vector<8x16xf32>
    "tpu.trace_start"() <{level = 10 : i32, message = "qd,kd->qk"}> : () -> ()
    %cst_24 = arith.constant dense<0.000000e+00> : vector<8x8xf32>
    %63 = tpu.matmul %60, %61, %cst_24 {dimension_numbers = #tpu.dot_dimension_numbers<[1], [1], [0], [0], [0, 0, 1, 0], [], []>} : vector<8x16xf32>, vector<8x16xf32>, vector<8x8xf32> -> vector<8x8xf32>
    "tpu.trace_stop"() : () -> ()
    %cst_25 = arith.constant 2.500000e-01 : f32
    %64 = vector.broadcast %cst_25 : f32 to vector<8x8xf32>
    %65 = arith.mulf %63, %64 : vector<8x8xf32>
    %cst_26 = arith.constant -1.000000e+30 : f32
    %66 = vector.broadcast %cst_26 : f32 to vector<8x8xf32>
    %67 = arith.select %40, %65, %66 : vector<8x8xi1>, vector<8x8xf32>
    %cst_27 = arith.constant dense<0xFF800000> : vector<8xf32>
    %68 = vector.multi_reduction <maximumf>, %67, %cst_27 [1] : vector<8x8xf32> to vector<8xf32>
    %69 = vector.shape_cast %68 : vector<8xf32> to vector<8x1xf32>
    %70 = vector.broadcast %69 : vector<8x1xf32> to vector<8x8xf32>
    %71 = arith.subf %67, %70 : vector<8x8xf32>
    %72 = math.exp %71 : vector<8x8xf32>
    %cst_28 = arith.constant dense<0.000000e+00> : vector<8xf32>
    %73 = vector.multi_reduction <add>, %72, %cst_28 [1] : vector<8x8xf32> to vector<8xf32>
    %74 = vector.shape_cast %73 : vector<8xf32> to vector<8x1xf32>
    %75 = tpu.reciprocal %74 {approx = true} : vector<8x1xf32> -> vector<8x1xf32>
    %76 = vector.broadcast %75 : vector<8x1xf32> to vector<8x8xf32>
    %77 = arith.mulf %72, %76 : vector<8x8xf32>
    %cst_29 = arith.constant dense<0.000000e+00> : vector<8x16xf32>
    %78 = tpu.matmul %77, %62, %cst_29 {dimension_numbers = #tpu.dot_dimension_numbers<[1], [0], [0], [1], [0, 0, 1, 1], [], []>} : vector<8x8xf32>, vector<8x16xf32>, vector<8x16xf32> -> vector<8x16xf32>
    %79 = tpu.concatenate %59, %78 in 1 : vector<8x16xf32>, vector<8x16xf32> -> vector<8x32xf32>
    %80 = arith.truncf %79 : vector<8x32xf32> to vector<8x32xbf16>
    %c0_30 = arith.constant 0 : index
    %c0_31 = arith.constant 0 : index
    %c0_32 = arith.constant 0 : index
    %81 = vector.load %arg6[%c0_30, %c0_31, %c0_32] : memref<1x32x32xbf16, #tpu.memory_space<vmem>>, vector<1x32x32xbf16>
    %82 = vector.shape_cast %81 : vector<1x32x32xbf16> to vector<32x32xbf16>
    %cst_33 = arith.constant dense<0.000000e+00> : vector<8x32xf32>
    %83 = tpu.matmul %80, %82, %cst_33 {dimension_numbers = #tpu.dot_dimension_numbers<[1], [0], [0], [1], [0, 0, 1, 1], [], []>} : vector<8x32xbf16>, vector<32x32xbf16>, vector<8x32xf32> -> vector<8x32xf32>
    %c0_34 = arith.constant 0 : index
    %c0_35 = arith.constant 0 : index
    %c0_36 = arith.constant 0 : index
    %84 = vector.load %arg7[%c0_34, %c0_35, %c0_36] : memref<1x1x32xf32, #tpu.memory_space<vmem>>, vector<1x1x32xf32>
    %85 = vector.shape_cast %84 : vector<1x1x32xf32> to vector<1x32xf32>
    %86 = vector.broadcast %85 : vector<1x32xf32> to vector<8x32xf32>
    %87 = arith.addf %83, %86 : vector<8x32xf32>
    %88 = arith.addf %3, %87 : vector<8x32xf32>
    %c0_37 = arith.constant 0 : index
    %c0_38 = arith.constant 0 : index
    %c0_39 = arith.constant 0 : index
    %89 = vector.load %arg8[%c0_37, %c0_38, %c0_39] : memref<1x2x32xf32, #tpu.memory_space<vmem>>, vector<1x1x32xf32>
    %90 = vector.shape_cast %89 : vector<1x1x32xf32> to vector<1x32xf32>
    %c0_40 = arith.constant 0 : index
    %c1_41 = arith.constant 1 : index
    %c0_42 = arith.constant 0 : index
    %91 = vector.load %arg8[%c0_40, %c1_41, %c0_42] : memref<1x2x32xf32, #tpu.memory_space<vmem>>, vector<1x1x32xf32>
    %92 = vector.shape_cast %91 : vector<1x1x32xf32> to vector<1x32xf32>
    %cst_43 = arith.constant dense<0.000000e+00> : vector<8xf32>
    %93 = vector.multi_reduction <add>, %88, %cst_43 [1] : vector<8x32xf32> to vector<8xf32>
    %94 = vector.shape_cast %93 : vector<8xf32> to vector<8x1xf32>
    %cst_44 = arith.constant 3.200000e+01 : f32
    %95 = vector.broadcast %cst_44 : f32 to vector<8x1xf32>
    %96 = arith.divf %94, %95 : vector<8x1xf32>
    %97 = vector.broadcast %96 : vector<8x1xf32> to vector<8x32xf32>
    %98 = arith.subf %88, %97 : vector<8x32xf32>
    %99 = arith.mulf %98, %98 : vector<8x32xf32>
    %cst_45 = arith.constant dense<0.000000e+00> : vector<8xf32>
    %100 = vector.multi_reduction <add>, %99, %cst_45 [1] : vector<8x32xf32> to vector<8xf32>
    %101 = vector.shape_cast %100 : vector<8xf32> to vector<8x1xf32>
    %cst_46 = arith.constant 3.200000e+01 : f32
    %102 = vector.broadcast %cst_46 : f32 to vector<8x1xf32>
    %103 = arith.divf %101, %102 : vector<8x1xf32>
    %104 = vector.broadcast %96 : vector<8x1xf32> to vector<8x32xf32>
    %105 = arith.subf %88, %104 : vector<8x32xf32>
    %cst_47 = arith.constant 9.99999974E-6 : f32
    %106 = vector.broadcast %cst_47 : f32 to vector<8x1xf32>
    %107 = arith.addf %103, %106 : vector<8x1xf32>
    %108 = math.rsqrt %107 : vector<8x1xf32>
    %109 = vector.broadcast %108 : vector<8x1xf32> to vector<8x32xf32>
    %110 = arith.mulf %105, %109 : vector<8x32xf32>
    %111 = vector.broadcast %90 : vector<1x32xf32> to vector<8x32xf32>
    %112 = arith.mulf %110, %111 : vector<8x32xf32>
    %113 = vector.broadcast %92 : vector<1x32xf32> to vector<8x32xf32>
    %114 = arith.addf %112, %113 : vector<8x32xf32>
    %115 = arith.truncf %114 : vector<8x32xf32> to vector<8x32xbf16>
    %c0_48 = arith.constant 0 : index
    %c0_49 = arith.constant 0 : index
    %c0_50 = arith.constant 0 : index
    %116 = vector.load %arg9[%c0_48, %c0_49, %c0_50] : memref<1x32x128xbf16, #tpu.memory_space<vmem>>, vector<1x32x128xbf16>
    %117 = vector.shape_cast %116 : vector<1x32x128xbf16> to vector<32x128xbf16>
    %cst_51 = arith.constant dense<0.000000e+00> : vector<8x128xf32>
    %118 = tpu.matmul %115, %117, %cst_51 {dimension_numbers = #tpu.dot_dimension_numbers<[1], [0], [0], [1], [0, 0, 1, 1], [], []>} : vector<8x32xbf16>, vector<32x128xbf16>, vector<8x128xf32> -> vector<8x128xf32>
    %c0_52 = arith.constant 0 : index
    %c0_53 = arith.constant 0 : index
    %c0_54 = arith.constant 0 : index
    %119 = vector.load %arg10[%c0_52, %c0_53, %c0_54] : memref<1x1x128xf32, #tpu.memory_space<vmem>>, vector<1x1x128xf32>
    %120 = vector.shape_cast %119 : vector<1x1x128xf32> to vector<1x128xf32>
    %121 = vector.broadcast %120 : vector<1x128xf32> to vector<8x128xf32>
    %122 = arith.addf %118, %121 : vector<8x128xf32>
    %cst_55 = arith.constant 5.000000e-01 : f32
    %123 = vector.broadcast %cst_55 : f32 to vector<8x128xf32>
    %124 = arith.mulf %123, %122 : vector<8x128xf32>
    %cst_56 = arith.constant 4.471500e-02 : f32
    %125 = vector.broadcast %cst_56 : f32 to vector<8x128xf32>
    %126 = arith.mulf %125, %122 : vector<8x128xf32>
    %127 = arith.mulf %126, %122 : vector<8x128xf32>
    %128 = arith.mulf %127, %122 : vector<8x128xf32>
    %129 = arith.addf %122, %128 : vector<8x128xf32>
    %cst_57 = arith.constant 0.797884583 : f32
    %130 = vector.broadcast %cst_57 : f32 to vector<8x128xf32>
    %131 = arith.mulf %130, %129 : vector<8x128xf32>
    %132 = math.tanh %131 : vector<8x128xf32>
    %cst_58 = arith.constant 1.000000e+00 : f32
    %133 = vector.broadcast %cst_58 : f32 to vector<8x128xf32>
    %134 = arith.addf %133, %132 : vector<8x128xf32>
    %135 = arith.mulf %124, %134 : vector<8x128xf32>
    %136 = arith.truncf %135 : vector<8x128xf32> to vector<8x128xbf16>
    %c0_59 = arith.constant 0 : index
    %c0_60 = arith.constant 0 : index
    %c0_61 = arith.constant 0 : index
    %137 = vector.load %arg11[%c0_59, %c0_60, %c0_61] : memref<1x128x32xbf16, #tpu.memory_space<vmem>>, vector<1x128x32xbf16>
    %138 = vector.shape_cast %137 : vector<1x128x32xbf16> to vector<128x32xbf16>
    %cst_62 = arith.constant dense<0.000000e+00> : vector<8x32xf32>
    %139 = tpu.matmul %136, %138, %cst_62 {dimension_numbers = #tpu.dot_dimension_numbers<[1], [0], [0], [1], [0, 0, 1, 1], [], []>} : vector<8x128xbf16>, vector<128x32xbf16>, vector<8x32xf32> -> vector<8x32xf32>
    %c0_63 = arith.constant 0 : index
    %c0_64 = arith.constant 0 : index
    %c0_65 = arith.constant 0 : index
    %140 = vector.load %arg12[%c0_63, %c0_64, %c0_65] : memref<1x1x32xf32, #tpu.memory_space<vmem>>, vector<1x1x32xf32>
    %141 = vector.shape_cast %140 : vector<1x1x32xf32> to vector<1x32xf32>
    %142 = vector.broadcast %141 : vector<1x32xf32> to vector<8x32xf32>
    %143 = arith.addf %139, %142 : vector<8x32xf32>
    %144 = arith.addf %88, %143 : vector<8x32xf32>
    %c0_66 = arith.constant 0 : index
    %c0_67 = arith.constant 0 : index
    %145 = vector.load %arg16[%c0_66, %c0_67] : memref<8x32xf32, #tpu.memory_space<vmem>>, vector<8x32xf32>
    tpu.vector_store %arg16[%c0_66, %c0_67], %144 {strides = array<i32>} : memref<8x32xf32, #tpu.memory_space<vmem>>, vector<8x32xf32>,
    %c1_i32 = arith.constant 1 : i32
    %146 = arith.cmpi eq, %arg1, %c1_i32 : i32
    %147 = arith.extui %146 : i1 to i32
    %c0_i32_68 = arith.constant 0 : i32
    %148 = arith.cmpi ne, %147, %c0_i32_68 : i32
    scf.if %148 {
      %c0_69 = arith.constant 0 : index
      %c0_70 = arith.constant 0 : index
      %149 = vector.load %arg13[%c0_69, %c0_70] : memref<2x32xf32, #tpu.memory_space<vmem>>, vector<1x32xf32>
      %c1_71 = arith.constant 1 : index
      %c0_72 = arith.constant 0 : index
      %150 = vector.load %arg13[%c1_71, %c0_72] : memref<2x32xf32, #tpu.memory_space<vmem>>, vector<1x32xf32>
      %cst_73 = arith.constant dense<0.000000e+00> : vector<8xf32>
      %151 = vector.multi_reduction <add>, %144, %cst_73 [1] : vector<8x32xf32> to vector<8xf32>
      %152 = vector.shape_cast %151 : vector<8xf32> to vector<8x1xf32>
      %cst_74 = arith.constant 3.200000e+01 : f32
      %153 = vector.broadcast %cst_74 : f32 to vector<8x1xf32>
      %154 = arith.divf %152, %153 : vector<8x1xf32>
      %155 = vector.broadcast %154 : vector<8x1xf32> to vector<8x32xf32>
      %156 = arith.subf %144, %155 : vector<8x32xf32>
      %157 = arith.mulf %156, %156 : vector<8x32xf32>
      %cst_75 = arith.constant dense<0.000000e+00> : vector<8xf32>
      %158 = vector.multi_reduction <add>, %157, %cst_75 [1] : vector<8x32xf32> to vector<8xf32>
      %159 = vector.shape_cast %158 : vector<8xf32> to vector<8x1xf32>
      %cst_76 = arith.constant 3.200000e+01 : f32
      %160 = vector.broadcast %cst_76 : f32 to vector<8x1xf32>
      %161 = arith.divf %159, %160 : vector<8x1xf32>
      %162 = vector.broadcast %154 : vector<8x1xf32> to vector<8x32xf32>
      %163 = arith.subf %144, %162 : vector<8x32xf32>
      %cst_77 = arith.constant 9.99999974E-6 : f32
      %164 = vector.broadcast %cst_77 : f32 to vector<8x1xf32>
      %165 = arith.addf %161, %164 : vector<8x1xf32>
      %166 = math.rsqrt %165 : vector<8x1xf32>
      %167 = vector.broadcast %166 : vector<8x1xf32> to vector<8x32xf32>
      %168 = arith.mulf %163, %167 : vector<8x32xf32>
      %169 = vector.broadcast %149 : vector<1x32xf32> to vector<8x32xf32>
      %170 = arith.mulf %168, %169 : vector<8x32xf32>
      %171 = vector.broadcast %150 : vector<1x32xf32> to vector<8x32xf32>
      %172 = arith.addf %170, %171 : vector<8x32xf32>
      %173 = arith.truncf %172 : vector<8x32xf32> to vector<8x32xbf16>
      %c0_78 = arith.constant 0 : index
      %c0_79 = arith.constant 0 : index
      %174 = vector.load %arg14[%c0_78, %c0_79] : memref<32x128xbf16, #tpu.memory_space<vmem>>, vector<32x128xbf16>
      %cst_80 = arith.constant dense<0.000000e+00> : vector<8x128xf32>
      %175 = tpu.matmul %173, %174, %cst_80 {dimension_numbers = #tpu.dot_dimension_numbers<[1], [0], [0], [1], [0, 0, 1, 1], [], []>} : vector<8x32xbf16>, vector<32x128xbf16>, vector<8x128xf32> -> vector<8x128xf32>
      %c0_81 = arith.constant 0 : index
      %c0_82 = arith.constant 0 : index
      %c0_83 = arith.constant 0 : index
      %176 = vector.load %arg15[%c0_81, %c0_82, %c0_83] : memref<1x8x128xf32, #tpu.memory_space<vmem>>, vector<1x8x128xf32>
      %177 = vector.shape_cast %176 : vector<1x8x128xf32> to vector<8x128xf32>
      %178 = vector.shape_cast %175 : vector<8x128xf32> to vector<1x8x128xf32>
      tpu.vector_store %arg15[%c0_81, %c0_82, %c0_83], %178 {strides = array<i32>} : memref<1x8x128xf32, #tpu.memory_space<vmem>>, vector<1x8x128xf32>,
    } else {
    }
    return
  }
  func.func @transform_0(%arg0: i32, %arg1: i32) -> (i32, i32, i32) {
    %c0_i32 = arith.constant 0 : i32
    %c0_i32_0 = arith.constant 0 : i32
    %c0_i32_1 = arith.constant 0 : i32
    return %arg0, %c0_i32, %c0_i32_0 : i32, i32, i32
  }
  func.func @transform_1(%arg0: i32, %arg1: i32) -> (i32, i32, i32) {
    %c0_i32 = arith.constant 0 : i32
    %c0_i32_0 = arith.constant 0 : i32
    %c0_i32_1 = arith.constant 0 : i32
    return %arg1, %c0_i32, %c0_i32_0 : i32, i32, i32
  }
  func.func @transform_2(%arg0: i32, %arg1: i32) -> (i32, i32, i32) {
    %c0_i32 = arith.constant 0 : i32
    %c0_i32_0 = arith.constant 0 : i32
    %c0_i32_1 = arith.constant 0 : i32
    return %arg1, %c0_i32, %c0_i32_0 : i32, i32, i32
  }
  func.func @transform_3(%arg0: i32, %arg1: i32) -> (i32, i32, i32) {
    %c0_i32 = arith.constant 0 : i32
    %c0_i32_0 = arith.constant 0 : i32
    %c0_i32_1 = arith.constant 0 : i32
    return %arg1, %c0_i32, %c0_i32_0 : i32, i32, i32
  }
  func.func @transform_4(%arg0: i32, %arg1: i32) -> (i32, i32, i32) {
    %c0_i32 = arith.constant 0 : i32
    %c0_i32_0 = arith.constant 0 : i32
    %c0_i32_1 = arith.constant 0 : i32
    return %arg1, %c0_i32, %c0_i32_0 : i32, i32, i32
  }
  func.func @transform_5(%arg0: i32, %arg1: i32) -> (i32, i32, i32) {
    %c0_i32 = arith.constant 0 : i32
    %c0_i32_0 = arith.constant 0 : i32
    %c0_i32_1 = arith.constant 0 : i32
    return %arg1, %c0_i32, %c0_i32_0 : i32, i32, i32
  }
  func.func @transform_6(%arg0: i32, %arg1: i32) -> (i32, i32, i32) {
    %c0_i32 = arith.constant 0 : i32
    %c0_i32_0 = arith.constant 0 : i32
    %c0_i32_1 = arith.constant 0 : i32
    return %arg1, %c0_i32, %c0_i32_0 : i32, i32, i32
  }
  func.func @transform_7(%arg0: i32, %arg1: i32) -> (i32, i32, i32) {
    %c0_i32 = arith.constant 0 : i32
    %c0_i32_0 = arith.constant 0 : i32
    %c0_i32_1 = arith.constant 0 : i32
    return %arg1, %c0_i32, %c0_i32_0 : i32, i32, i32
  }
  func.func @transform_8(%arg0: i32, %arg1: i32) -> (i32, i32, i32) {
    %c0_i32 = arith.constant 0 : i32
    %c0_i32_0 = arith.constant 0 : i32
    %c0_i32_1 = arith.constant 0 : i32
    return %arg1, %c0_i32, %c0_i32_0 : i32, i32, i32
  }
  func.func @transform_9(%arg0: i32, %arg1: i32) -> (i32, i32, i32) {
    %c0_i32 = arith.constant 0 : i32
    %c0_i32_0 = arith.constant 0 : i32
    %c0_i32_1 = arith.constant 0 : i32
    return %arg1, %c0_i32, %c0_i32_0 : i32, i32, i32
  }
  func.func @transform_10(%arg0: i32, %arg1: i32) -> (i32, i32, i32) {
    %c0_i32 = arith.constant 0 : i32
    %c0_i32_0 = arith.constant 0 : i32
    %c0_i32_1 = arith.constant 0 : i32
    return %arg1, %c0_i32, %c0_i32_0 : i32, i32, i32
  }
  func.func @transform_11(%arg0: i32, %arg1: i32) -> (i32, i32) {
    %c0_i32 = arith.constant 0 : i32
    %c0_i32_0 = arith.constant 0 : i32
    %c0_i32_1 = arith.constant 0 : i32
    return %c0_i32, %c0_i32_0 : i32, i32
  }
  func.func @transform_12(%arg0: i32, %arg1: i32) -> (i32, i32) {
    %c0_i32 = arith.constant 0 : i32
    %c0_i32_0 = arith.constant 0 : i32
    %c0_i32_1 = arith.constant 0 : i32
    return %c0_i32, %c0_i32_0 : i32, i32
  }
  func.func @transform_13(%arg0: i32, %arg1: i32) -> (i32, i32, i32) {
    %c0_i32 = arith.constant 0 : i32
    %c0_i32_0 = arith.constant 0 : i32
    %c0_i32_1 = arith.constant 0 : i32
    return %arg0, %c0_i32, %c0_i32_0 : i32, i32, i32
  }
}

</mosaic_0001>

<llo_original>
// kernel: gpt_forward.1
$region0: #{gpt_forward.1}
  #allocation0 [shape = 'u32[]', space=smem, size = 0x4, offset = 0x4, fixed_abs, tag = 'smem constant byte address 0x4 - core index']
  #allocation1 [shape = 'u32[72,128]{1,0:T(1,128)}', space=vmem, size = 0x9000, scoped, tag = 'internal scratch']
  #allocation2 [shape = 'f32[8,32]{1,0:T(8,128)}', space=vmem, size = 0x1000, scoped, tag = 'scratch operand']
  %s0 = inlined_call_operand.vmem [shape: f32[2,8,32], index: 0, kind: input, shape index: {}]
  %s1 = inlined_call_operand.vmem [shape: f32[2,2,32], index: 1, kind: input, shape index: {}]
  %s2 = inlined_call_operand.vmem [shape: bf16[2,32,96], index: 2, kind: input, shape index: {}]
  %s3 = inlined_call_operand.vmem [shape: f32[2,1,96], index: 3, kind: input, shape index: {}]
  %s4 = inlined_call_operand.vmem [shape: bf16[2,32,32], index: 4, kind: input, shape index: {}]
  %s5 = inlined_call_operand.vmem [shape: f32[2,1,32], index: 5, kind: input, shape index: {}]
  %s6 = inlined_call_operand.vmem [shape: f32[2,2,32], index: 6, kind: input, shape index: {}]
  %s7 = inlined_call_operand.vmem [shape: bf16[2,32,128], index: 7, kind: input, shape index: {}]
  %s8 = inlined_call_operand.vmem [shape: f32[2,1,128], index: 8, kind: input, shape index: {}]
  %s9 = inlined_call_operand.vmem [shape: bf16[2,128,32], index: 9, kind: input, shape index: {}]
  %s10 = inlined_call_operand.vmem [shape: f32[2,1,32], index: 10, kind: input, shape index: {}]
  %s11 = inlined_call_operand.vmem [shape: f32[2,32], index: 11, kind: input, shape index: {}]
  %s12 = inlined_call_operand.vmem [shape: bf16[32,128], index: 12, kind: input, shape index: {}]
  %s13 = inlined_call_operand.hbm [shape: f32[2,8,128], index: 13, kind: output, shape index: {}]
  %s14 = sld [smem:[#allocation0]]
  $region93: #{gpt_forward.1} parent=0
    _
  %s16 = ssub.s32 1, %s14
  %s17 = scalar_select 0, %s16, %s14
  $region1: #{gpt_forward.1} parent=0
    #allocation3 [shape = 'u8[8192]{0}', space=vmem, size = 0x2000, scoped, tag = 'output window, operand 0']
    #allocation4 [shape = 's32[2]{0}', space=sflag, size = 0x8, scoped, tag = 'scoped memory for gpt_forward.1']
    %18 = vsyncpa [#allocation4], 0
    %s19 = scalar_lea.sflag [#allocation4], 1
    %20 = vsyncpa %s19, 0
    loop: start=0, step=1, limit=6
    $region2: #{gpt_forward.1} parent=1 // loop_pre_header
      _
    $region3: #{gpt_forward.1} parent=1 // loop_header
      %s22 = sphi 0, %s26
      %p23 = scmp.ge.s32.totalorder %s22, 6
      %s29 = sphi 0, %s41
      %s30 = sphi 0, %s37
      %s31 = sphi 0, %s29
      %s32 = sphi 0, %s30
      %s33 = sphi 0, %s31
      %s34 = sphi 0, %s32
      %s44 = sphi 0, %s46
      %s47 = sphi 0, %s44
      %s48 = sphi 0, %s47
      %s64 = sphi 0, %s48
      %s70 = sphi 0, %s72
      %s73 = sphi 0, %s70
      %s74 = sphi 0, %s73
      %s90 = sphi 0, %s74
      %s96 = sphi 0, %s98
      %s99 = sphi 0, %s96
      %s100 = sphi 0, %s99
      %s116 = sphi 0, %s100
      %s122 = sphi 0, %s124
      %s125 = sphi 0, %s122
      %s126 = sphi 0, %s125
      %s142 = sphi 0, %s126
      %s148 = sphi 0, %s150
      %s151 = sphi 0, %s148
      %s152 = sphi 0, %s151
      %s168 = sphi 0, %s152
      %s174 = sphi 0, %s176
      %s177 = sphi 0, %s174
      %s178 = sphi 0, %s177
      %s194 = sphi 0, %s178
      %s200 = sphi 0, %s202
      %s203 = sphi 0, %s200
      %s204 = sphi 0, %s203
      %s220 = sphi 0, %s204
      %s226 = sphi 0, %s228
      %s229 = sphi 0, %s226
      %s230 = sphi 0, %s229
      %s246 = sphi 0, %s230
      %s252 = sphi 0, %s254
      %s255 = sphi 0, %s252
      %s256 = sphi 0, %s255
      %s272 = sphi 0, %s256
      %s278 = sphi 0, %s280
      %s281 = sphi 0, %s278
      %s282 = sphi 0, %s281
      %s298 = sphi 0, %s282
      %s304 = sphi 0, %s306
      %s307 = sphi 0, %s304
      %s308 = sphi 0, %s307
      %s324 = sphi 0, %s308
      %s328 = sphi 0, %s328
      %s330 = sphi 0, %s328
      %s331 = sphi 0, %s330
      %s345 = sphi 0, %s331
      %s349 = sphi 0, %s349
      %s351 = sphi 0, %s349
      %s352 = sphi 0, %s351
      %s366 = sphi 0, %s352
      %s372 = sphi 0, %s374
      %s375 = sphi 0, %s372
      %s376 = sphi 0, %s375
      %s392 = sphi 0, %s376
    $region4: #{gpt_forward.1} parent=1 // loop_header_branch
      %25 = sbr.rel (%p23) target = $region8
    $region5: #{gpt_forward.1} parent=1 // loop_body
      %s27 = ssub.s32 %s22, 1
      %s28 = ssub.s32 %s22, 2
      %s35 = sadd.s32 1, %s30
      %p36 = scmp.ge.s32.totalorder %s35, 2
      %s37 = scalar_select %p36, 0, %s35
      %s38 = sadd.s32 1, %s29
      %s39 = scalar_select %p36, %s38, %s29
      %p40 = scmp.ge.s32.totalorder %s39, 2
      %s41 = scalar_select %p40, 0, %s39
      %s42 = ssub.s32 %s29, %s41
      %p43 = scmp.eq.s32.totalorder %s42, 0
      %s45 = sadd.s32 %s44, 1
      %s46 = scalar_select %p43, %s44, %s45
      %p49 = pneg %p43
      %p50 = scmp.eq.s32.totalorder %s22, 3
      %p51 = por %p49, %p50
      %p52 = scmp.ne.s32.totalorder %s44, %s47
      %p53 = scmp.eq.s32.totalorder %s22, 0
      %p54 = por %p52, %p53
      %p55 = scmp.ne.s32.totalorder %s44, %s47
      %p56 = scmp.eq.s32.totalorder %s27, 3
      %p57 = por %p55, %p56
      %p58 = scmp.ne.s32.totalorder %s47, %s48
      %p59 = scmp.eq.s32.totalorder %s27, 0
      %p60 = por %p58, %p59
      %p61 = scmp.ne.s32.totalorder %s47, %s48
      %p62 = scmp.eq.s32.totalorder %s28, 3
      %p63 = por %p61, %p62
      %p65 = scmp.ne.s32.totalorder %s48, %s64
      %p66 = scmp.eq.s32.totalorder %s28, 0
      %p67 = por %p65, %p66
      %s68 = ssub.s32 %s30, %s37
      %p69 = scmp.eq.s32.totalorder %s68, 0
      %s71 = sadd.s32 %s70, 1
      %s72 = scalar_select %p69, %s70, %s71
      %p75 = pneg %p69
      %p76 = scmp.eq.s32.totalorder %s22, 3
      %p77 = por %p75, %p76
      %p78 = scmp.ne.s32.totalorder %s70, %s73
      %p79 = scmp.eq.s32.totalorder %s22, 0
      %p80 = por %p78, %p79
      %p81 = scmp.ne.s32.totalorder %s70, %s73
      %p82 = scmp.eq.s32.totalorder %s27, 3
      %p83 = por %p81, %p82
      %p84 = scmp.ne.s32.totalorder %s73, %s74
      %p85 = scmp.eq.s32.totalorder %s27, 0
      %p86 = por %p84, %p85
      %p87 = scmp.ne.s32.totalorder %s73, %s74
      %p88 = scmp.eq.s32.totalorder %s28, 3
      %p89 = por %p87, %p88
      %p91 = scmp.ne.s32.totalorder %s74, %s90
      %p92 = scmp.eq.s32.totalorder %s28, 0
      %p93 = por %p91, %p92
      %s94 = ssub.s32 %s30, %s37
      %p95 = scmp.eq.s32.totalorder %s94, 0
      %s97 = sadd.s32 %s96, 1
      %s98 = scalar_select %p95, %s96, %s97
      %p101 = pneg %p95
      %p102 = scmp.eq.s32.totalorder %s22, 3
      %p103 = por %p101, %p102
      %p104 = scmp.ne.s32.totalorder %s96, %s99
      %p105 = scmp.eq.s32.totalorder %s22, 0
      %p106 = por %p104, %p105
      %p107 = scmp.ne.s32.totalorder %s96, %s99
      %p108 = scmp.eq.s32.totalorder %s27, 3
      %p109 = por %p107, %p108
      %p110 = scmp.ne.s32.totalorder %s99, %s100
      %p111 = scmp.eq.s32.totalorder %s27, 0
      %p112 = por %p110, %p111
      %p113 = scmp.ne.s32.totalorder %s99, %s100
      %p114 = scmp.eq.s32.totalorder %s28, 3
      %p115 = por %p113, %p114
      %p117 = scmp.ne.s32.totalorder %s100, %s116
      %p118 = scmp.eq.s32.totalorder %s28, 0
      %p119 = por %p117, %p118
      %s120 = ssub.s32 %s30, %s37
      %p121 = scmp.eq.s32.totalorder %s120, 0
      %s123 = sadd.s32 %s122, 1
      %s124 = scalar_select %p121, %s122, %s123
      %p127 = pneg %p121
      %p128 = scmp.eq.s32.totalorder %s22, 3
      %p129 = por %p127, %p128
      %p130 = scmp.ne.s32.totalorder %s122, %s125
      %p131 = scmp.eq.s32.totalorder %s22, 0
      %p132 = por %p130, %p131
      %p133 = scmp.ne.s32.totalorder %s122, %s125
      %p134 = scmp.eq.s32.totalorder %s27, 3
      %p135 = por %p133, %p134
      %p136 = scmp.ne.s32.totalorder %s125, %s126
      %p137 = scmp.eq.s32.totalorder %s27, 0
      %p138 = por %p136, %p137
      %p139 = scmp.ne.s32.totalorder %s125, %s126
      %p140 = scmp.eq.s32.totalorder %s28, 3
      %p141 = por %p139, %p140
      %p143 = scmp.ne.s32.totalorder %s126, %s142
      %p144 = scmp.eq.s32.totalorder %s28, 0
      %p145 = por %p143, %p144
      %s146 = ssub.s32 %s30, %s37
      %p147 = scmp.eq.s32.totalorder %s146, 0
      %s149 = sadd.s32 %s148, 1
      %s150 = scalar_select %p147, %s148, %s149
      %p153 = pneg %p147
      %p154 = scmp.eq.s32.totalorder %s22, 3
      %p155 = por %p153, %p154
      %p156 = scmp.ne.s32.totalorder %s148, %s151
      %p157 = scmp.eq.s32.totalorder %s22, 0
      %p158 = por %p156, %p157
      %p159 = scmp.ne.s32.totalorder %s148, %s151
      %p160 = scmp.eq.s32.totalorder %s27, 3
      %p161 = por %p159, %p160
      %p162 = scmp.ne.s32.totalorder %s151, %s152
      %p163 = scmp.eq.s32.totalorder %s27, 0
      %p164 = por %p162, %p163
      %p165 = scmp.ne.s32.totalorder %s151, %s152
      %p166 = scmp.eq.s32.totalorder %s28, 3
      %p167 = por %p165, %p166
      %p169 = scmp.ne.s32.totalorder %s152, %s168
      %p170 = scmp.eq.s32.totalorder %s28, 0
      %p171 = por %p169, %p170
      %s172 = ssub.s32 %s30, %s37
      %p173 = scmp.eq.s32.totalorder %s172, 0
      %s175 = sadd.s32 %s174, 1
      %s176 = scalar_select %p173, %s174, %s175
      %p179 = pneg %p173
      %p180 = scmp.eq.s32.totalorder %s22, 3
      %p181 = por %p179, %p180
      %p182 = scmp.ne.s32.totalorder %s174, %s177
      %p183 = scmp.eq.s32.totalorder %s22, 0
      %p184 = por %p182, %p183
      %p185 = scmp.ne.s32.totalorder %s174, %s177
      %p186 = scmp.eq.s32.totalorder %s27, 3
      %p187 = por %p185, %p186
      %p188 = scmp.ne.s32.totalorder %s177, %s178
      %p189 = scmp.eq.s32.totalorder %s27, 0
      %p190 = por %p188, %p189
      %p191 = scmp.ne.s32.totalorder %s177, %s178
      %p192 = scmp.eq.s32.totalorder %s28, 3
      %p193 = por %p191, %p192
      %p195 = scmp.ne.s32.totalorder %s178, %s194
      %p196 = scmp.eq.s32.totalorder %s28, 0
      %p197 = por %p195, %p196
      %s198 = ssub.s32 %s30, %s37
      %p199 = scmp.eq.s32.totalorder %s198, 0
      %s201 = sadd.s32 %s200, 1
      %s202 = scalar_select %p199, %s200, %s201
      %p205 = pneg %p199
      %p206 = scmp.eq.s32.totalorder %s22, 3
      %p207 = por %p205, %p206
      %p208 = scmp.ne.s32.totalorder %s200, %s203
      %p209 = scmp.eq.s32.totalorder %s22, 0
      %p210 = por %p208, %p209
      %p211 = scmp.ne.s32.totalorder %s200, %s203
      %p212 = scmp.eq.s32.totalorder %s27, 3
      %p213 = por %p211, %p212
      %p214 = scmp.ne.s32.totalorder %s203, %s204
      %p215 = scmp.eq.s32.totalorder %s27, 0
      %p216 = por %p214, %p215
      %p217 = scmp.ne.s32.totalorder %s203, %s204
      %p218 = scmp.eq.s32.totalorder %s28, 3
      %p219 = por %p217, %p218
      %p221 = scmp.ne.s32.totalorder %s204, %s220
      %p222 = scmp.eq.s32.totalorder %s28, 0
      %p223 = por %p221, %p222
      %s224 = ssub.s32 %s30, %s37
      %p225 = scmp.eq.s32.totalorder %s224, 0
      %s227 = sadd.s32 %s226, 1
      %s228 = scalar_select %p225, %s226, %s227
      %p231 = pneg %p225
      %p232 = scmp.eq.s32.totalorder %s22, 3
      %p233 = por %p231, %p232
      %p234 = scmp.ne.s32.totalorder %s226, %s229
      %p235 = scmp.eq.s32.totalorder %s22, 0
      %p236 = por %p234, %p235
      %p237 = scmp.ne.s32.totalorder %s226, %s229
      %p238 = scmp.eq.s32.totalorder %s27, 3
      %p239 = por %p237, %p238
      %p240 = scmp.ne.s32.totalorder %s229, %s230
      %p241 = scmp.eq.s32.totalorder %s27, 0
      %p242 = por %p240, %p241
      %p243 = scmp.ne.s32.totalorder %s229, %s230
      %p244 = scmp.eq.s32.totalorder %s28, 3
      %p245 = por %p243, %p244
      %p247 = scmp.ne.s32.totalorder %s230, %s246
      %p248 = scmp.eq.s32.totalorder %s28, 0
      %p249 = por %p247, %p248
      %s250 = ssub.s32 %s30, %s37
      %p251 = scmp.eq.s32.totalorder %s250, 0
      %s253 = sadd.s32 %s252, 1
      %s254 = scalar_select %p251, %s252, %s253
      %p257 = pneg %p251
      %p258 = scmp.eq.s32.totalorder %s22, 3
      %p259 = por %p257, %p258
      %p260 = scmp.ne.s32.totalorder %s252, %s255
      %p261 = scmp.eq.s32.totalorder %s22, 0
      %p262 = por %p260, %p261
      %p263 = scmp.ne.s32.totalorder %s252, %s255
      %p264 = scmp.eq.s32.totalorder %s27, 3
      %p265 = por %p263, %p264
      %p266 = scmp.ne.s32.totalorder %s255, %s256
      %p267 = scmp.eq.s32.totalorder %s27, 0
      %p268 = por %p266, %p267
      %p269 = scmp.ne.s32.totalorder %s255, %s256
      %p270 = scmp.eq.s32.totalorder %s28, 3
      %p271 = por %p269, %p270
      %p273 = scmp.ne.s32.totalorder %s256, %s272
      %p274 = scmp.eq.s32.totalorder %s28, 0
      %p275 = por %p273, %p274
      %s276 = ssub.s32 %s30, %s37
      %p277 = scmp.eq.s32.totalorder %s276, 0
      %s279 = sadd.s32 %s278, 1
      %s280 = scalar_select %p277, %s278, %s279
      %p283 = pneg %p277
      %p284 = scmp.eq.s32.totalorder %s22, 3
      %p285 = por %p283, %p284
      %p286 = scmp.ne.s32.totalorder %s278, %s281
      %p287 = scmp.eq.s32.totalorder %s22, 0
      %p288 = por %p286, %p287
      %p289 = scmp.ne.s32.totalorder %s278, %s281
      %p290 = scmp.eq.s32.totalorder %s27, 3
      %p291 = por %p289, %p290
      %p292 = scmp.ne.s32.totalorder %s281, %s282
      %p293 = scmp.eq.s32.totalorder %s27, 0
      %p294 = por %p292, %p293
      %p295 = scmp.ne.s32.totalorder %s281, %s282
      %p296 = scmp.eq.s32.totalorder %s28, 3
      %p297 = por %p295, %p296
      %p299 = scmp.ne.s32.totalorder %s282, %s298
      %p300 = scmp.eq.s32.totalorder %s28, 0
      %p301 = por %p299, %p300
      %s302 = ssub.s32 %s30, %s37
      %p303 = scmp.eq.s32.totalorder %s302, 0
      %s305 = sadd.s32 %s304, 1
      %s306 = scalar_select %p303, %s304, %s305
      %p309 = pneg %p303
      %p310 = scmp.eq.s32.totalorder %s22, 3
      %p311 = por %p309, %p310
      %p312 = scmp.ne.s32.totalorder %s304, %s307
      %p313 = scmp.eq.s32.totalorder %s22, 0
      %p314 = por %p312, %p313
      %p315 = scmp.ne.s32.totalorder %s304, %s307
      %p316 = scmp.eq.s32.totalorder %s27, 3
      %p317 = por %p315, %p316
      %p318 = scmp.ne.s32.totalorder %s307, %s308
      %p319 = scmp.eq.s32.totalorder %s27, 0
      %p320 = por %p318, %p319
      %p321 = scmp.ne.s32.totalorder %s307, %s308
      %p322 = scmp.eq.s32.totalorder %s28, 3
      %p323 = por %p321, %p322
      %p325 = scmp.ne.s32.totalorder %s308, %s324
      %p326 = scmp.eq.s32.totalorder %s28, 0
      %p327 = por %p325, %p326
      %s329 = sadd.s32 %s328, 1
      %p332 = scmp.eq.s32.totalorder %s22, 3
      %p333 = scmp.ne.s32.totalorder %s328, %s330
      %p334 = scmp.eq.s32.totalorder %s22, 0
      %p335 = por %p333, %p334
      %p336 = scmp.ne.s32.totalorder %s328, %s330
      %p337 = scmp.eq.s32.totalorder %s27, 3
      %p338 = por %p336, %p337
      %p339 = scmp.ne.s32.totalorder %s330, %s331
      %p340 = scmp.eq.s32.totalorder %s27, 0
      %p341 = por %p339, %p340
      %p342 = scmp.ne.s32.totalorder %s330, %s331
      %p343 = scmp.eq.s32.totalorder %s28, 3
      %p344 = por %p342, %p343
      %p346 = scmp.ne.s32.totalorder %s331, %s345
      %p347 = scmp.eq.s32.totalorder %s28, 0
      %p348 = por %p346, %p347
      %s350 = sadd.s32 %s349, 1
      %p353 = scmp.eq.s32.totalorder %s22, 3
      %p354 = scmp.ne.s32.totalorder %s349, %s351
      %p355 = scmp.eq.s32.totalorder %s22, 0
      %p356 = por %p354, %p355
      %p357 = scmp.ne.s32.totalorder %s349, %s351
      %p358 = scmp.eq.s32.totalorder %s27, 3
      %p359 = por %p357, %p358
      %p360 = scmp.ne.s32.totalorder %s351, %s352
      %p361 = scmp.eq.s32.totalorder %s27, 0
      %p362 = por %p360, %p361
      %p363 = scmp.ne.s32.totalorder %s351, %s352
      %p364 = scmp.eq.s32.totalorder %s28, 3
      %p365 = por %p363, %p364
      %p367 = scmp.ne.s32.totalorder %s352, %s366
      %p368 = scmp.eq.s32.totalorder %s28, 0
      %p369 = por %p367, %p368
      %s370 = ssub.s32 %s29, %s41
      %p371 = scmp.eq.s32.totalorder %s370, 0
      %s373 = sadd.s32 %s372, 1
      %s374 = scalar_select %p371, %s372, %s373
      %p377 = pneg %p371
      %p378 = scmp.eq.s32.totalorder %s22, 3
      %p379 = por %p377, %p378
      %p380 = scmp.ne.s32.totalorder %s372, %s375
      %p381 = scmp.eq.s32.totalorder %s22, 0
      %p382 = por %p380, %p381
      %p383 = scmp.ne.s32.totalorder %s372, %s375
      %p384 = scmp.eq.s32.totalorder %s27, 3
      %p385 = por %p383, %p384
      %p386 = scmp.ne.s32.totalorder %s375, %s376
      %p387 = scmp.eq.s32.totalorder %s27, 0
      %p388 = por %p386, %p387
      %p389 = scmp.ne.s32.totalorder %s375, %s376
      %p390 = scmp.eq.s32.totalorder %s28, 3
      %p391 = por %p389, %p390
      %p393 = scmp.ne.s32.totalorder %s376, %s392
      %p394 = scmp.eq.s32.totalorder %s28, 0
      %p395 = por %p393, %p394
      %p396 = scmp.le.s32.totalorder 1, %s22
      %p397 = scmp.lt.s32.totalorder %s22, 5
      %p398 = pnand %p396, %p397
      %p399 = pneg %p398
      // Predicated region
      $region9: #{gpt_forward.1} parent=5 // pred_check
        _
      $region10: #{gpt_forward.1} parent=5 // pred_check_branch
        %401 = sbr.rel (%p398) target = $region12
      $region11: #{gpt_forward.1} parent=5 // pred_region
        %s402 = ssub.s32 %s22, 1
        // Predicated region
        $region13: #{gpt_forward.1} parent=11 // pred_check
          %p403 = pneg %p341
        $region14: #{gpt_forward.1} parent=11 // pred_check_branch
          %405 = sbr.rel (%p403) target = $region16
        $region15: #{gpt_forward.1} parent=11 // pred_region
          _
        $region16: #{gpt_forward.1} parent=11 // pred_fallthru
          _
        // Predicated region
        $region17: #{gpt_forward.1} parent=11 // pred_check
          %p406 = pneg %p362
        $region18: #{gpt_forward.1} parent=11 // pred_check_branch
          %408 = sbr.rel (%p406) target = $region20
        $region19: #{gpt_forward.1} parent=11 // pred_region
          _
        $region20: #{gpt_forward.1} parent=11 // pred_fallthru
          _
      $region12: #{gpt_forward.1} parent=5 // pred_fallthru
        _
      %p409 = scmp.lt.s32.totalorder %s22, 4
      // Predicated region
      $region21: #{gpt_forward.1} parent=5 // pred_check
        %p410 = pneg %p409
      $region22: #{gpt_forward.1} parent=5 // pred_check_branch
        %412 = sbr.rel (%p410) target = $region24
      $region23: #{gpt_forward.1} parent=5 // pred_region
        // Predicated region
        $region25: #{gpt_forward.1} parent=23 // pred_check
          %p413 = pneg %p54
        $region26: #{gpt_forward.1} parent=23 // pred_check_branch
          %415 = sbr.rel (%p413) target = $region28
        $region27: #{gpt_forward.1} parent=23 // pred_region
          %p416 = scmp.lt.s32.totalorder %s29, 1
          %s417 = scalar_select %p416, %s29, 1
          %s418 = smul.addr %s417, 8
          %s419 = scalar_lea.vmem %s0, %s418
        $region28: #{gpt_forward.1} parent=23 // pred_fallthru
          _
        // Predicated region
        $region29: #{gpt_forward.1} parent=23 // pred_check
          %p420 = pneg %p80
        $region30: #{gpt_forward.1} parent=23 // pred_check_branch
          %422 = sbr.rel (%p420) target = $region32
        $region31: #{gpt_forward.1} parent=23 // pred_region
          %p423 = scmp.lt.s32.totalorder %s30, 1
          %s424 = scalar_select %p423, %s30, 1
          %s425 = smul.addr %s424, 2
          %s426 = scalar_lea.vmem %s1, %s425
        $region32: #{gpt_forward.1} parent=23 // pred_fallthru
          _
        // Predicated region
        $region33: #{gpt_forward.1} parent=23 // pred_check
          %p427 = pneg %p106
        $region34: #{gpt_forward.1} parent=23 // pred_check_branch
          %429 = sbr.rel (%p427) target = $region36
        $region35: #{gpt_forward.1} parent=23 // pred_region
          %p430 = scmp.lt.s32.totalorder %s30, 1
          %s431 = scalar_select %p430, %s30, 1
          %s432 = smul.addr %s431, 4
          %s433 = smul.addr %s432, 4
          %s434 = scalar_lea.vmem %s2, %s433
        $region36: #{gpt_forward.1} parent=23 // pred_fallthru
          _
        // Predicated region
        $region37: #{gpt_forward.1} parent=23 // pred_check
          %p435 = pneg %p132
        $region38: #{gpt_forward.1} parent=23 // pred_check_branch
          %437 = sbr.rel (%p435) target = $region40
        $region39: #{gpt_forward.1} parent=23 // pred_region
          %p438 = scmp.lt.s32.totalorder %s30, 1
          %s439 = scalar_select %p438, %s30, 1
          %s440 = scalar_lea.vmem %s3, %s439
        $region40: #{gpt_forward.1} parent=23 // pred_fallthru
          _
        // Predicated region
        $region41: #{gpt_forward.1} parent=23 // pred_check
          %p441 = pneg %p158
        $region42: #{gpt_forward.1} parent=23 // pred_check_branch
          %443 = sbr.rel (%p441) target = $region44
        $region43: #{gpt_forward.1} parent=23 // pred_region
          %p444 = scmp.lt.s32.totalorder %s30, 1
          %s445 = scalar_select %p444, %s30, 1
          %s446 = smul.addr %s445, 4
          %s447 = smul.addr %s446, 4
          %s448 = scalar_lea.vmem %s4, %s447
        $region44: #{gpt_forward.1} parent=23 // pred_fallthru
          _
        // Predicated region
        $region45: #{gpt_forward.1} parent=23 // pred_check
          %p449 = pneg %p184
        $region46: #{gpt_forward.1} parent=23 // pred_check_branch
          %451 = sbr.rel (%p449) target = $region48
        $region47: #{gpt_forward.1} parent=23 // pred_region
          %p452 = scmp.lt.s32.totalorder %s30, 1
          %s453 = scalar_select %p452, %s30, 1
          %s454 = scalar_lea.vmem %s5, %s453
        $region48: #{gpt_forward.1} parent=23 // pred_fallthru
          _
        // Predicated region
        $region49: #{gpt_forward.1} parent=23 // pred_check
          %p455 = pneg %p210
        $region50: #{gpt_forward.1} parent=23 // pred_check_branch
          %457 = sbr.rel (%p455) target = $region52
        $region51: #{gpt_forward.1} parent=23 // pred_region
          %p458 = scmp.lt.s32.totalorder %s30, 1
          %s459 = scalar_select %p458, %s30, 1
          %s460 = smul.addr %s459, 2
          %s461 = scalar_lea.vmem %s6, %s460
        $region52: #{gpt_forward.1} parent=23 // pred_fallthru
          _
        // Predicated region
        $region53: #{gpt_forward.1} parent=23 // pred_check
          %p462 = pneg %p236
        $region54: #{gpt_forward.1} parent=23 // pred_check_branch
          %464 = sbr.rel (%p462) target = $region56
        $region55: #{gpt_forward.1} parent=23 // pred_region
          %p465 = scmp.lt.s32.totalorder %s30, 1
          %s466 = scalar_select %p465, %s30, 1
          %s467 = smul.addr %s466, 4
          %s468 = smul.addr %s467, 4
          %s469 = scalar_lea.vmem %s7, %s468
        $region56: #{gpt_forward.1} parent=23 // pred_fallthru
          _
        // Predicated region
        $region57: #{gpt_forward.1} parent=23 // pred_check
          %p470 = pneg %p262
        $region58: #{gpt_forward.1} parent=23 // pred_check_branch
          %472 = sbr.rel (%p470) target = $region60
        $region59: #{gpt_forward.1} parent=23 // pred_region
          %p473 = scmp.lt.s32.totalorder %s30, 1
          %s474 = scalar_select %p473, %s30, 1
          %s475 = scalar_lea.vmem %s8, %s474
        $region60: #{gpt_forward.1} parent=23 // pred_fallthru
          _
        // Predicated region
        $region61: #{gpt_forward.1} parent=23 // pred_check
          %p476 = pneg %p288
        $region62: #{gpt_forward.1} parent=23 // pred_check_branch
          %478 = sbr.rel (%p476) target = $region64
        $region63: #{gpt_forward.1} parent=23 // pred_region
          %p479 = scmp.lt.s32.totalorder %s30, 1
          %s480 = scalar_select %p479, %s30, 1
          %s481 = smul.addr %s480, 16
          %s482 = smul.addr %s481, 4
          %s483 = scalar_lea.vmem %s9, %s482
        $region64: #{gpt_forward.1} parent=23 // pred_fallthru
          _
        // Predicated region
        $region65: #{gpt_forward.1} parent=23 // pred_check
          %p484 = pneg %p314
        $region66: #{gpt_forward.1} parent=23 // pred_check_branch
          %486 = sbr.rel (%p484) target = $region68
        $region67: #{gpt_forward.1} parent=23 // pred_region
          %p487 = scmp.lt.s32.totalorder %s30, 1
          %s488 = scalar_select %p487, %s30, 1
          %s489 = scalar_lea.vmem %s10, %s488
        $region68: #{gpt_forward.1} parent=23 // pred_fallthru
          _
      $region24: #{gpt_forward.1} parent=5 // pred_fallthru
        _
      %p490 = scmp.le.s32.totalorder 1, %s22
      %p491 = scmp.lt.s32.totalorder %s22, 5
      %p492 = pnand %p490, %p491
      %p493 = pneg %p492
      // Predicated region
      $region69: #{gpt_forward.1} parent=5 // pred_check
        _
      $region70: #{gpt_forward.1} parent=5 // pred_check_branch
        %495 = sbr.rel (%p492) target = $region72
      $region71: #{gpt_forward.1} parent=5 // pred_region
        %s496 = ssub.s32 %s22, 1
        %p497 = scmp.lt.s32.totalorder %s31, 1
        %s498 = scalar_select %p497, %s31, 1
        %s499 = smul.addr %s498, 8
        %s500 = scalar_lea.vmem %s0, %s499
        %p501 = pneg %p60
        %p502 = pneg %p57
        %p503 = scmp.lt.s32.totalorder %s32, 1
        %s504 = scalar_select %p503, %s32, 1
        %s505 = smul.addr %s504, 2
        %s506 = scalar_lea.vmem %s1, %s505
        %p507 = pneg %p86
        %p508 = pneg %p83
        %p509 = scmp.lt.s32.totalorder %s32, 1
        %s510 = scalar_select %p509, %s32, 1
        %s511 = smul.addr %s510, 4
        %s512 = smul.addr %s511, 4
        %s513 = scalar_lea.vmem %s2, %s512
        %p514 = pneg %p112
        %p515 = pneg %p109
        %p516 = scmp.lt.s32.totalorder %s32, 1
        %s517 = scalar_select %p516, %s32, 1
        %s518 = scalar_lea.vmem %s3, %s517
        %p519 = pneg %p138
        %p520 = pneg %p135
        %p521 = scmp.lt.s32.totalorder %s32, 1
        %s522 = scalar_select %p521, %s32, 1
        %s523 = smul.addr %s522, 4
        %s524 = smul.addr %s523, 4
        %s525 = scalar_lea.vmem %s4, %s524
        %p526 = pneg %p164
        %p527 = pneg %p161
        %p528 = scmp.lt.s32.totalorder %s32, 1
        %s529 = scalar_select %p528, %s32, 1
        %s530 = scalar_lea.vmem %s5, %s529
        %p531 = pneg %p190
        %p532 = pneg %p187
        %p533 = scmp.lt.s32.totalorder %s32, 1
        %s534 = scalar_select %p533, %s32, 1
        %s535 = smul.addr %s534, 2
        %s536 = scalar_lea.vmem %s6, %s535
        %p537 = pneg %p216
        %p538 = pneg %p213
        %p539 = scmp.lt.s32.totalorder %s32, 1
        %s540 = scalar_select %p539, %s32, 1
        %s541 = smul.addr %s540, 4
        %s542 = smul.addr %s541, 4
        %s543 = scalar_lea.vmem %s7, %s542
        %p544 = pneg %p242
        %p545 = pneg %p239
        %p546 = scmp.lt.s32.totalorder %s32, 1
        %s547 = scalar_select %p546, %s32, 1
        %s548 = scalar_lea.vmem %s8, %s547
        %p549 = pneg %p268
        %p550 = pneg %p265
        %p551 = scmp.lt.s32.totalorder %s32, 1
        %s552 = scalar_select %p551, %s32, 1
        %s553 = smul.addr %s552, 16
        %s554 = smul.addr %s553, 4
        %s555 = scalar_lea.vmem %s9, %s554
        %p556 = pneg %p294
        %p557 = pneg %p291
        %p558 = scmp.lt.s32.totalorder %s32, 1
        %s559 = scalar_select %p558, %s32, 1
        %s560 = scalar_lea.vmem %s10, %s559
        %p561 = pneg %p320
        %p562 = pneg %p317
        %p563 = pneg %p341
        %p564 = pneg %p338
        %p565 = pneg %p362
        %p566 = pneg %p359
        %p567 = pneg %p388
        %p568 = pneg %p385
        %s569 = sand.u32 %s375, 1
        %s570 = scalar_lea.sflag [#allocation4], %s569
        %s571 = sand.u32 %s375, 1
        %s572 = smul.addr %s571, 8
        %s573 = scalar_lea.vmem [#allocation3], %s572
        %p574 = scmp.lt.s32.totalorder %s31, 1
        %s575 = scalar_select %p574, %s31, 1
        %s576 = smul.addr %s575, 8
        %s577 = scalar_lea.vmem %s0, %s576
        %p578 = scmp.lt.s32.totalorder %s32, 1
        %s579 = scalar_select %p578, %s32, 1
        %s580 = smul.addr %s579, 2
        %s581 = scalar_lea.vmem %s1, %s580
        %p582 = scmp.lt.s32.totalorder %s32, 1
        %s583 = scalar_select %p582, %s32, 1
        %s584 = smul.addr %s583, 4
        %s585 = smul.addr %s584, 4
        %s586 = scalar_lea.vmem %s2, %s585
        %p587 = scmp.lt.s32.totalorder %s32, 1
        %s588 = scalar_select %p587, %s32, 1
        %s589 = scalar_lea.vmem %s3, %s588
        %p590 = scmp.lt.s32.totalorder %s32, 1
        %s591 = scalar_select %p590, %s32, 1
        %s592 = smul.addr %s591, 4
        %s593 = smul.addr %s592, 4
        %s594 = scalar_lea.vmem %s4, %s593
        %p595 = scmp.lt.s32.totalorder %s32, 1
        %s596 = scalar_select %p595, %s32, 1
        %s597 = scalar_lea.vmem %s5, %s596
        %p598 = scmp.lt.s32.totalorder %s32, 1
        %s599 = scalar_select %p598, %s32, 1
        %s600 = smul.addr %s599, 2
        %s601 = scalar_lea.vmem %s6, %s600
        %p602 = scmp.lt.s32.totalorder %s32, 1
        %s603 = scalar_select %p602, %s32, 1
        %s604 = smul.addr %s603, 4
        %s605 = smul.addr %s604, 4
        %s606 = scalar_lea.vmem %s7, %s605
        %p607 = scmp.lt.s32.totalorder %s32, 1
        %s608 = scalar_select %p607, %s32, 1
        %s609 = scalar_lea.vmem %s8, %s608
        %p610 = scmp.lt.s32.totalorder %s32, 1
        %s611 = scalar_select %p610, %s32, 1
        %s612 = smul.addr %s611, 16
        %s613 = smul.addr %s612, 4
        %s614 = scalar_lea.vmem %s9, %s613
        %p615 = scmp.lt.s32.totalorder %s32, 1
        %s616 = scalar_select %p615, %s32, 1
        %s617 = scalar_lea.vmem %s10, %s616
        %p619 = scmp.eq.s32.totalorder %s32, 0
        // Predicated region
        $region73: #{gpt_forward.1} parent=71 // pred_check
          %p620 = pneg %p619
        $region74: #{gpt_forward.1} parent=71 // pred_check_branch
          %622 = sbr.rel (%p620) target = $region76
        $region75: #{gpt_forward.1} parent=71 // pred_region
          %v623 = vld [vmem:[%s577] sm:$0xff]
          %vm624 = vcmask 261120
          %625 = vst.msk [vmem:[#allocation2] sm:$0xff] %vm624, %v623
        $region76: #{gpt_forward.1} parent=71 // pred_fallthru
          _
        %v626 = vld [vmem:[#allocation2] sm:$0xff]
        %v627 = vld [vmem:[%s581] sm:$0x1]
        %v628 = vld [vmem:[%s581 + $0x1] sm:$0x1]
        %vm629 = vcmask 261120
        %v630 = vsel %vm629, %v626, 0.0
        %631 = vadd.xlane.f32.xlu0 %v630
        %v632 = vpop.xlane.xlu0 %631
        %v633 = vrcp.pop 32.0
        %v634 = vmul.f32 32.0, %v633
        %v635 = vsub.f32 1.0, %v634
        %v636 = vmul.f32 %v633, %v635
        %v637 = vadd.f32 %v633, %v636
        %vm638 = vweird.f32 %v633
        %v639 = vsel %vm638, %v633, %v637
        %v640 = vmul.f32 %v632, %v639
        %v641 = vsub.f32 %v626, %v640
        %v642 = vmul.f32 %v641, %v641
        %v643 = vsel %vm629, %v642, 0.0
        %644 = vadd.xlane.f32.xlu0 %v643
        %v645 = vpop.xlane.xlu0 %644
        %v646 = vmul.f32 %v645, %v639
        %v647 = vadd.f32 %v646, 1e-05
        %v648 = vrsqrt.pop %v647
        %v649 = vmul.f32 %v648, %v647
        %v650 = vmul.f32 %v649, %v648
        %v651 = vmul.f32 0.5, %v650
        %v652 = vsub.f32 1.5, %v651
        %v653 = vmul.f32 %v648, %v652
        %vm654 = vweird.f32 %v647
        %vm655 = vweird.f32 %v648
        %vm656 = vmor %vm654, %vm655
        %v657 = vsel %vm656, %v648, %v653
        %v658 = vmul.f32 %v641, %v657
        %v659 = vperm.slane %v627, 0
        %v660 = vmul.f32 %v658, %v659
        %v661 = vperm.slane %v628, 0
        %v662 = vadd.f32 %v660, %v661
        %v663 = vpack.c.bf16 %v662, %v662
        %v664 = vld [vmem:[%s586] sm:$0xf]
        %v665 = vld [vmem:[%s586 + $0x4] sm:$0xf]
        %v666 = vld [vmem:[%s586 + $0x8] sm:$0xf]
        %v667 = vld [vmem:[%s586 + $0xc] sm:$0xf]
        %v668 = vld [vmem:[%s589] sm:$0x1]
        %v670 = vperm.slane %v668, 0
        %v676 = vunpack.c.l.b16 %v664
        %v677 = vunpack.c.l.b16 %v665
        %v678 = vunpack.c.l.b16 %v666
        %v679 = vunpack.c.l.b16 %v667
        %v680 = vpack.c.b16 %v677, %v676
        %v681 = vpack.c.b16 %v679, %v678
        %v685 = vsel %vm629, %v663, 0
        %687 = vmatpush.bf16.msra.mxu0 0
        %688 = vmatpush.bf16.msra.mxu0 0
        %689 = vmatpush.bf16.msra.mxu0 0
        %690 = vmatpush.bf16.msra.mxu0 0
        %691 = vmatpush.bf16.msra.mxu0 0
        %692 = vmatpush.bf16.msra.mxu0 0
        %693 = vmatpush.bf16.msra.mxu0 %v681
        %694 = vmatpush.bf16.msra.mxu0 %v680
        %695 = vmatmul.bf16.gmra.mxu0 %v685
        %v696 = vpop.f32.mrf.mxu0
        %v697 = vadd.f32 %v670, %v696
        %v698 = vpop.f32.mrf.mxu0
        %699 = vdwg.mxu0
        %v700 = vlaneseq
        %v701 = vshrl.u32 %v700, 7
        %v702 = vlaneseq
        %v703 = vand.u32 %v702, 127
        %vm704 = vcmp.ge.s32.totalorder %v701, %v703
        %706 = vrot.lane.b32.xlu0 %v697, 96
        %v707 = vpop.permute.xlu0 %706
        %vm708 = vcmask 130048
        %v709 = vsel %vm708, %v697, 0
        %v711 = vsel %vm708, %v707, 0
        %713 = vmatpush.xpose.msra.mxu0 0.0
        %714 = vmatpush.xpose.msra.mxu0 0.0
        %715 = vmatpush.xpose.msra.mxu0 0.0
        %716 = vmatpush.xpose.msra.mxu0 0.0
        %717 = vmatpush.xpose.msra.mxu0 0.0
        %718 = vmatpush.xpose.msra.mxu0 0.0
        %719 = vmatpush.xpose.msra.mxu0 0.0
        %720 = vmatpush.xpose.msra.mxu0 0.0
        %721 = vmatpush.xpose.msra.mxu0 0.0
        %722 = vmatpush.xpose.msra.mxu0 0.0
        %723 = vmatpush.xpose.msra.mxu0 0.0
        %724 = vmatpush.xpose.msra.mxu0 0.0
        %725 = vmatpush.xpose.msra.mxu0 0.0
        %726 = vmatpush.xpose.msra.mxu0 0.0
        %727 = vmatpush.xpose.msra.mxu0 0.0
        %728 = vmatpush.xpose.msra.mxu0 %v711
        %729 = vmatmul.f32.gmra.mxu0 %v709
        %v730 = vpop.f32.mrf.mxu0
        %v731 = vadd.f32 0.0, %v730
        %732 = vdwg.mxu0
        %v733 = vmul.f32 %v731, 0.25
        %v734 = vsel %vm704, %v733, -1e+30
        %vm735 = vcmask 64512
        %v736 = vsel %vm735, %v734, -inf
        %737 = vmax.xlane.f32.xlu0 %v736
        %v738 = vpop.xlane.xlu0 %737
        %v739 = vsub.f32 %v734, %v738
        %v740 = vmul.f32 %v739, 1.442695
        %v741 = vpow.pop %v740
        %v742 = vsel %vm735, %v741, 0.0
        %743 = vadd.xlane.f32.xlu0 %v742
        %v744 = vpop.xlane.xlu0 %743
        %v745 = vrcp.pop %v744
        %v746 = vmul.f32 %v741, %v745
        %747 = vrot.lane.b32.xlu0 %v697, 64
        %v748 = vpop.permute.xlu0 %747
        %v751 = vsel %vm735, %v746, 0
        %753 = vmatpush.msra.mxu0 0.0
        %754 = vmatpush.msra.mxu0 0.0
        %755 = vmatpush.msra.mxu0 0.0
        %756 = vmatpush.msra.mxu0 0.0
        %757 = vmatpush.msra.mxu0 0.0
        %758 = vmatpush.msra.mxu0 0.0
        %759 = vmatpush.msra.mxu0 0.0
        %760 = vmatpush.msra.mxu0 0.0
        %761 = vmatpush.msra.mxu0 0.0
        %762 = vmatpush.msra.mxu0 0.0
        %763 = vmatpush.msra.mxu0 0.0
        %764 = vmatpush.msra.mxu0 0.0
        %765 = vmatpush.msra.mxu0 0.0
        %766 = vmatpush.msra.mxu0 0.0
        %767 = vmatpush.msra.mxu0 0.0
        %768 = vmatpush.msra.mxu0 %v748
        %769 = vmatmul.f32.gmra.mxu0 %v751
        %v770 = vpop.f32.mrf.mxu0
        %v771 = vadd.f32 0.0, %v770
        %772 = vdwg.mxu0
        %773 = vrot.lane.b32.xlu0 %v697, 112
        %v774 = vpop.permute.xlu0 %773
        %775 = vrot.lane.b32.xlu0 %v697, 80
        %v776 = vpop.permute.xlu0 %775
        %v777 = vsel %vm708, %v774, 0
        %v779 = vsel %vm708, %v776, 0
        %781 = vmatpush.xpose.msra.mxu0 0.0
        %782 = vmatpush.xpose.msra.mxu0 0.0
        %783 = vmatpush.xpose.msra.mxu0 0.0
        %784 = vmatpush.xpose.msra.mxu0 0.0
        %785 = vmatpush.xpose.msra.mxu0 0.0
        %786 = vmatpush.xpose.msra.mxu0 0.0
        %787 = vmatpush.xpose.msra.mxu0 0.0
        %788 = vmatpush.xpose.msra.mxu0 0.0
        %789 = vmatpush.xpose.msra.mxu0 0.0
        %790 = vmatpush.xpose.msra.mxu0 0.0
        %791 = vmatpush.xpose.msra.mxu0 0.0
        %792 = vmatpush.xpose.msra.mxu0 0.0
        %793 = vmatpush.xpose.msra.mxu0 0.0
        %794 = vmatpush.xpose.msra.mxu0 0.0
        %795 = vmatpush.xpose.msra.mxu0 0.0
        %796 = vmatpush.xpose.msra.mxu0 %v779
        %797 = vmatmul.f32.gmra.mxu0 %v777
        %v798 = vpop.f32.mrf.mxu0
        %v799 = vadd.f32 0.0, %v798
        %800 = vdwg.mxu0
        %v801 = vmul.f32 %v799, 0.25
        %v802 = vsel %vm704, %v801, -1e+30
        %v803 = vsel %vm735, %v802, -inf
        %804 = vmax.xlane.f32.xlu0 %v803
        %v805 = vpop.xlane.xlu0 %804
        %v806 = vsub.f32 %v802, %v805
        %v807 = vmul.f32 %v806, 1.442695
        %v808 = vpow.pop %v807
        %v809 = vsel %vm735, %v808, 0.0
        %810 = vadd.xlane.f32.xlu0 %v809
        %v811 = vpop.xlane.xlu0 %810
        %v812 = vrcp.pop %v811
        %v813 = vmul.f32 %v808, %v812
        %814 = vrot.lane.b32.xlu0 %v697, 48
        %v815 = vpop.permute.xlu0 %814
        %v818 = vsel %vm735, %v813, 0
        %820 = vmatpush.msra.mxu0 0.0
        %821 = vmatpush.msra.mxu0 0.0
        %822 = vmatpush.msra.mxu0 0.0
        %823 = vmatpush.msra.mxu0 0.0
        %824 = vmatpush.msra.mxu0 0.0
        %825 = vmatpush.msra.mxu0 0.0
        %826 = vmatpush.msra.mxu0 0.0
        %827 = vmatpush.msra.mxu0 0.0
        %828 = vmatpush.msra.mxu0 0.0
        %829 = vmatpush.msra.mxu0 0.0
        %830 = vmatpush.msra.mxu0 0.0
        %831 = vmatpush.msra.mxu0 0.0
        %832 = vmatpush.msra.mxu0 0.0
        %833 = vmatpush.msra.mxu0 0.0
        %834 = vmatpush.msra.mxu0 0.0
        %835 = vmatpush.msra.mxu0 %v815
        %836 = vmatmul.f32.gmra.mxu0 %v818
        %v837 = vpop.f32.mrf.mxu0
        %v838 = vadd.f32 0.0, %v837
        %839 = vdwg.mxu0
        %841 = vrot.lane.b32.xlu0 %v838, 16
        %v842 = vpop.permute.xlu0 %841
        %v844 = vsel %vm708, %v771, %v842
        %v845 = vpack.c.bf16 %v844, %v844
        %v846 = vld [vmem:[%s594] sm:$0xf]
        %v847 = vld [vmem:[%s594 + $0x4] sm:$0xf]
        %v848 = vld [vmem:[%s594 + $0x8] sm:$0xf]
        %v849 = vld [vmem:[%s594 + $0xc] sm:$0xf]
        %v850 = vld [vmem:[%s597] sm:$0x1]
        %v852 = vperm.slane %v850, 0
        %v858 = vunpack.c.l.b16 %v846
        %v859 = vunpack.c.l.b16 %v847
        %v860 = vunpack.c.l.b16 %v848
        %v861 = vunpack.c.l.b16 %v849
        %v862 = vpack.c.b16 %v859, %v858
        %v863 = vpack.c.b16 %v861, %v860
        %v867 = vsel %vm629, %v845, 0
        %869 = vmatpush.bf16.msra.mxu0 0
        %870 = vmatpush.bf16.msra.mxu0 0
        %871 = vmatpush.bf16.msra.mxu0 0
        %872 = vmatpush.bf16.msra.mxu0 0
        %873 = vmatpush.bf16.msra.mxu0 0
        %874 = vmatpush.bf16.msra.mxu0 0
        %875 = vmatpush.bf16.msra.mxu0 %v863
        %876 = vmatpush.bf16.msra.mxu0 %v862
        %877 = vmatmul.bf16.gmra.mxu0 %v867
        %v878 = vpop.f32.mrf.mxu0
        %v879 = vadd.f32 %v852, %v878
        %v880 = vpop.f32.mrf.mxu0
        %881 = vdwg.mxu0
        %v882 = vadd.f32 %v626, %v879
        %v883 = vld [vmem:[%s601] sm:$0x1]
        %v884 = vld [vmem:[%s601 + $0x1] sm:$0x1]
        %v885 = vsel %vm629, %v882, 0.0
        %886 = vadd.xlane.f32.xlu0 %v885
        %v887 = vpop.xlane.xlu0 %886
        %v888 = vmul.f32 %v887, %v639
        %v889 = vsub.f32 %v882, %v888
        %v890 = vmul.f32 %v889, %v889
        %v891 = vsel %vm629, %v890, 0.0
        %892 = vadd.xlane.f32.xlu0 %v891
        %v893 = vpop.xlane.xlu0 %892
        %v894 = vmul.f32 %v893, %v639
        %v895 = vadd.f32 %v894, 1e-05
        %v896 = vrsqrt.pop %v895
        %v897 = vmul.f32 %v896, %v895
        %v898 = vmul.f32 %v897, %v896
        %v899 = vmul.f32 0.5, %v898
        %v900 = vsub.f32 1.5, %v899
        %v901 = vmul.f32 %v896, %v900
        %vm902 = vweird.f32 %v895
        %vm903 = vweird.f32 %v896
        %vm904 = vmor %vm902, %vm903
        %v905 = vsel %vm904, %v896, %v901
        %v906 = vmul.f32 %v889, %v905
        %v907 = vperm.slane %v883, 0
        %v908 = vmul.f32 %v906, %v907
        %v909 = vperm.slane %v884, 0
        %v910 = vadd.f32 %v908, %v909
        %v911 = vpack.c.bf16 %v910, %v910
        %v912 = vld [vmem:[%s606] sm:$0xf]
        %v913 = vld [vmem:[%s606 + $0x4] sm:$0xf]
        %v914 = vld [vmem:[%s606 + $0x8] sm:$0xf]
        %v915 = vld [vmem:[%s606 + $0xc] sm:$0xf]
        %v916 = vld [vmem:[%s609] sm:$0x1]
        %v918 = vperm.slane %v916, 0
        %v924 = vunpack.c.l.b16 %v912
        %v925 = vunpack.c.l.b16 %v913
        %v926 = vunpack.c.l.b16 %v914
        %v927 = vunpack.c.l.b16 %v915
        %v928 = vpack.c.b16 %v925, %v924
        %v929 = vpack.c.b16 %v927, %v926
        %v933 = vsel %vm629, %v911, 0
        %935 = vmatpush.bf16.msra.mxu0 0
        %936 = vmatpush.bf16.msra.mxu0 0
        %937 = vmatpush.bf16.msra.mxu0 0
        %938 = vmatpush.bf16.msra.mxu0 0
        %939 = vmatpush.bf16.msra.mxu0 0
        %940 = vmatpush.bf16.msra.mxu0 0
        %941 = vmatpush.bf16.msra.mxu0 %v929
        %942 = vmatpush.bf16.msra.mxu0 %v928
        %943 = vmatmul.bf16.gmra.mxu0 %v933
        %v944 = vpop.f32.mrf.mxu0
        %v945 = vadd.f32 %v918, %v944
        %v946 = vpop.f32.mrf.mxu0
        %947 = vdwg.mxu0
        %v948 = vmul.f32 %v945, 0.5
        %v949 = vmul.f32 %v945, 0.044715
        %v950 = vmul.f32 %v949, %v945
        %v951 = vmul.f32 %v950, %v945
        %v952 = vadd.f32 %v945, %v951
        %v953 = vmul.f32 %v952, 0.7978846
        %v954 = vtanh.pop %v953
        %v955 = vadd.f32 %v954, 1.0
        %v956 = vmul.f32 %v948, %v955
        %v957 = vpack.c.bf16 %v956, %v956
        %v958 = vld [vmem:[%s614] sm:$0xf]
        %v959 = vld [vmem:[%s614 + $0x4] sm:$0xf]
        %v960 = vld [vmem:[%s614 + $0x8] sm:$0xf]
        %v961 = vld [vmem:[%s614 + $0xc] sm:$0xf]
        %v962 = vld [vmem:[%s614 + $0x10] sm:$0xf]
        %v963 = vld [vmem:[%s614 + $0x14] sm:$0xf]
        %v964 = vld [vmem:[%s614 + $0x18] sm:$0xf]
        %v965 = vld [vmem:[%s614 + $0x1c] sm:$0xf]
        %v966 = vld [vmem:[%s614 + $0x20] sm:$0xf]
        %v967 = vld [vmem:[%s614 + $0x24] sm:$0xf]
        %v968 = vld [vmem:[%s614 + $0x28] sm:$0xf]
        %v969 = vld [vmem:[%s614 + $0x2c] sm:$0xf]
        %v970 = vld [vmem:[%s614 + $0x30] sm:$0xf]
        %v971 = vld [vmem:[%s614 + $0x34] sm:$0xf]
        %v972 = vld [vmem:[%s614 + $0x38] sm:$0xf]
        %v973 = vld [vmem:[%s614 + $0x3c] sm:$0xf]
        %v974 = vld [vmem:[%s617] sm:$0x1]
        %v976 = vperm.slane %v974, 0
        %v994 = vunpack.c.l.b16 %v958
        %v995 = vunpack.c.l.b16 %v959
        %v996 = vunpack.c.l.b16 %v960
        %v997 = vunpack.c.l.b16 %v961
        %v998 = vunpack.c.l.b16 %v962
        %v999 = vunpack.c.l.b16 %v963
        %v1000 = vunpack.c.l.b16 %v964
        %v1001 = vunpack.c.l.b16 %v965
        %v1002 = vunpack.c.l.b16 %v966
        %v1003 = vunpack.c.l.b16 %v967
        %v1004 = vunpack.c.l.b16 %v968
        %v1005 = vunpack.c.l.b16 %v969
        %v1006 = vunpack.c.l.b16 %v970
        %v1007 = vunpack.c.l.b16 %v971
        %v1008 = vunpack.c.l.b16 %v972
        %v1009 = vunpack.c.l.b16 %v973
        %v1010 = vpack.c.b16 %v995, %v994
        %v1011 = vpack.c.b16 %v997, %v996
        %v1012 = vpack.c.b16 %v999, %v998
        %v1013 = vpack.c.b16 %v1001, %v1000
        %v1014 = vpack.c.b16 %v1003, %v1002
        %v1015 = vpack.c.b16 %v1005, %v1004
        %v1016 = vpack.c.b16 %v1007, %v1006
        %v1017 = vpack.c.b16 %v1009, %v1008
        %1026 = vmatpush.bf16.msra.mxu0 %v1017
        %1027 = vmatpush.bf16.msra.mxu0 %v1016
        %1028 = vmatpush.bf16.msra.mxu0 %v1015
        %1029 = vmatpush.bf16.msra.mxu0 %v1014
        %1030 = vmatpush.bf16.msra.mxu0 %v1013
        %1031 = vmatpush.bf16.msra.mxu0 %v1012
        %1032 = vmatpush.bf16.msra.mxu0 %v1011
        %1033 = vmatpush.bf16.msra.mxu0 %v1010
        %1034 = vmatmul.bf16.gmra.mxu0 %v957
        %v1035 = vpop.f32.mrf.mxu0
        %v1036 = vadd.f32 %v976, %v1035
        %v1037 = vpop.f32.mrf.mxu0
        %1038 = vdwg.mxu0
        %v1039 = vadd.f32 %v882, %v1036
        %1040 = vst.msk [vmem:[#allocation2] sm:$0xff] %vm629, %v1039
        %p1041 = scmp.eq.s32.totalorder %s32, 1
        // Predicated region
        $region77: #{gpt_forward.1} parent=71 // pred_check
          %p1042 = pneg %p1041
        $region78: #{gpt_forward.1} parent=71 // pred_check_branch
          %1044 = sbr.rel (%p1042) target = $region80
        $region79: #{gpt_forward.1} parent=71 // pred_region
          %v1045 = vld [vmem:[%s11] sm:$0x1]
          %v1046 = vld [vmem:[%s11 + $0x1] sm:$0x1]
          %v1047 = vsel %vm629, %v1039, 0.0
          %1048 = vadd.xlane.f32.xlu0 %v1047
          %v1049 = vpop.xlane.xlu0 %1048
          %v1050 = vmul.f32 %v1049, %v639
          %v1051 = vsub.f32 %v1039, %v1050
          %v1052 = vmul.f32 %v1051, %v1051
          %v1053 = vsel %vm629, %v1052, 0.0
          %1054 = vadd.xlane.f32.xlu0 %v1053
          %v1055 = vpop.xlane.xlu0 %1054
          %v1056 = vmul.f32 %v1055, %v639
          %v1057 = vadd.f32 %v1056, 1e-05
          %v1058 = vrsqrt.pop %v1057
          %v1059 = vmul.f32 %v1058, %v1057
          %v1060 = vmul.f32 %v1059, %v1058
          %v1061 = vmul.f32 0.5, %v1060
          %v1062 = vsub.f32 1.5, %v1061
          %v1063 = vmul.f32 %v1058, %v1062
          %vm1064 = vweird.f32 %v1057
          %vm1065 = vweird.f32 %v1058
          %vm1066 = vmor %vm1064, %vm1065
          %v1067 = vsel %vm1066, %v1058, %v1063
          %v1068 = vmul.f32 %v1051, %v1067
          %v1069 = vperm.slane %v1045, 0
          %v1070 = vmul.f32 %v1068, %v1069
          %v1071 = vperm.slane %v1046, 0
          %v1072 = vadd.f32 %v1070, %v1071
          %v1073 = vpack.c.bf16 %v1072, %v1072
          %v1074 = vld [vmem:[%s12] sm:$0xf]
          %v1075 = vld [vmem:[%s12 + $0x4] sm:$0xf]
          %v1076 = vld [vmem:[%s12 + $0x8] sm:$0xf]
          %v1077 = vld [vmem:[%s12 + $0xc] sm:$0xf]
          %v1082 = vunpack.c.l.b16 %v1074
          %v1083 = vunpack.c.l.b16 %v1075
          %v1084 = vunpack.c.l.b16 %v1076
          %v1085 = vunpack.c.l.b16 %v1077
          %v1086 = vpack.c.b16 %v1083, %v1082
          %v1087 = vpack.c.b16 %v1085, %v1084
          %v1091 = vsel %vm629, %v1073, 0
          %1093 = vmatpush.bf16.msra.mxu0 0
          %1094 = vmatpush.bf16.msra.mxu0 0
          %1095 = vmatpush.bf16.msra.mxu0 0
          %1096 = vmatpush.bf16.msra.mxu0 0
          %1097 = vmatpush.bf16.msra.mxu0 0
          %1098 = vmatpush.bf16.msra.mxu0 0
          %1099 = vmatpush.bf16.msra.mxu0 %v1087
          %1100 = vmatpush.bf16.msra.mxu0 %v1086
          %1101 = vmatmul.bf16.gmra.mxu0 %v1091
          %v1102 = vpop.f32.mrf.mxu0
          %v1103 = vadd.f32 0.0, %v1102
          %v1104 = vpop.f32.mrf.mxu0
          %1105 = vdwg.mxu0
          %1106 = vst [vmem:[%s573] sm:$0xff] %v1103
        $region80: #{gpt_forward.1} parent=71 // pred_fallthru
          _
        %s1107 = sand.u32 %s375, 1
        %s1108 = scalar_lea.sflag [#allocation4], %s1107
        %s1109 = sand.u32 %s375, 1
        %s1110 = smul.addr %s1109, 8
        %s1111 = scalar_lea.vmem [#allocation3], %s1110
        // Predicated region
        $region81: #{gpt_forward.1} parent=71 // pred_check
          %p1112 = pneg %p385
        $region82: #{gpt_forward.1} parent=71 // pred_check_branch
          %1114 = sbr.rel (%p1112) target = $region84
        $region83: #{gpt_forward.1} parent=71 // pred_region
          %1116 = vsyncadd %s1108, 0
          %s1117 = smul.addr %s31, 8
          %s1118 = scalar_lea.hbm %s13, %s1117
          %s1120 = sshll.u32 %s1111, 4
          %s1121 = int_to_ptr.vmem [resolvable:$true] %s1120
          %s1122 = sshll.u32 %s1118, 4
          %s1123 = int_to_ptr.hbm [resolvable:$true] %s1122
          %1125 = dma.vmem_to_hbm [thread:$0]  %s1121, 128, %s1123, %s1108
        $region84: #{gpt_forward.1} parent=71 // pred_fallthru
          _
      $region72: #{gpt_forward.1} parent=5 // pred_fallthru
        _
      %p1126 = scmp.le.s32.totalorder 2, %s22
      // Predicated region
      $region85: #{gpt_forward.1} parent=5 // pred_check
        %p1127 = pneg %p1126
      $region86: #{gpt_forward.1} parent=5 // pred_check_branch
        %1129 = sbr.rel (%p1127) target = $region88
      $region87: #{gpt_forward.1} parent=5 // pred_region
        %s1130 = ssub.s32 %s22, 2
        // Predicated region
        $region89: #{gpt_forward.1} parent=87 // pred_check
          %p1131 = pneg %p391
        $region90: #{gpt_forward.1} parent=87 // pred_check_branch
          %1133 = sbr.rel (%p1131) target = $region92
        $region91: #{gpt_forward.1} parent=87 // pred_region
          %s1134 = sand.u32 %s376, 1
          %s1135 = scalar_lea.sflag [#allocation4], %s1134
          %s1136 = sand.u32 %s376, 1
          %s1137 = smul.addr %s1136, 8
          %s1138 = scalar_lea.vmem [#allocation3], %s1137
          %1140 = dma.done %s1135, 128
        $region92: #{gpt_forward.1} parent=87 // pred_fallthru
          _
      $region88: #{gpt_forward.1} parent=5 // pred_fallthru
        _
    $region6: #{gpt_forward.1} parent=1 // loop_footer
      %s26 = sadd.s32 1, %s22
    $region7: #{gpt_forward.1} parent=1 // loop_footer_branch
      %21 = sbr.rel target = $region3
    $region8: #{gpt_forward.1} parent=1 // loop_exit
      _
    %1141 = vsyncpa [#allocation4], 1
    %s1142 = scalar_lea.sflag [#allocation4], 1
    %1143 = vsyncpa %s1142, 1

</llo_original>
